<compile_context>
chip_gen: v6e
topology: v6e:2x2x1
jax: 0.10.0
libtpu: 0.0.40
codegen_flags: <defaults>
</compile_context>

<pallas_src>
import functools
import numpy as np

import jax
import jax.numpy as jnp
from jax.experimental import pallas as pl
from jax.experimental.pallas import tpu as pltpu

EPS = 1e-5  # torch nn.LayerNorm default


# ---------------- shared math helpers -----------------------------------------------


def _layernorm(x, g, b):
    mu = jnp.mean(x, axis=-1, keepdims=True)
    var = jnp.mean(jnp.square(x - mu), axis=-1, keepdims=True)  # biased, like torch
    return (x - mu) * jax.lax.rsqrt(var + EPS) * g + b


_SQRT_2_OVER_PI = 0.7978845608028654


def _gelu_tanh(x):
    # tanh-approx GELU: tanh rides the EUP slot instead of a ~12-VALU-op erf
    # polynomial.  |delta| vs torch's erf-based nn.GELU() <= ~3e-3 worst case.
    return 0.5 * x * (1.0 + jnp.tanh(_SQRT_2_OVER_PI * (x + 0.044715 * x * x * x)))


def _gelu_erf(x):
    # Exact torch nn.GELU() semantics, used only in the pure-JAX reference.
    return 0.5 * x * (1.0 + jax.lax.erf(x * (2.0 ** -0.5)))


# ---------------- Pallas kernel: whole layer stack, one (batch, layer) grid ---------


def _layer_stack_kernel(x_ref, wqkv_ref, wout_ref, w1_ref, w2_ref, vd_ref, vm_ref,
                        o_ref, carry_ref, *, heads, dim_head):
    l = pl.program_id(1)
    f32, bf16 = jnp.float32, jnp.bfloat16
    inner = heads * dim_head

    # Layer 0: load this batch's activation from the HBM input into the VMEM carry.
    @pl.when(l == 0)
    def _():
        carry_ref[...] = x_ref[...].astype(f32)

    x = carry_ref[...]                                # (N, D) f32, layer input
    vd = vd_ref[...]                                  # (6, D) packed LN/bias vectors
    g1, b1, bo = vd[0:1], vd[1:2], vd[2:3]
    g2, b2, bb2 = vd[3:4], vd[4:5], vd[5:6]
    bb1 = vm_ref[...]                                 # (1, mlp)

    # ----- PreNorm -> multi-head attention -> out proj, + residual -----
    xn = _layernorm(x, g1, b1)
    # Fused lane-dense QKV projection (softmax scale folded into the Q columns).
    qkv = jnp.dot(xn.astype(bf16), wqkv_ref[...],
                  preferred_element_type=f32)         # (N, 3*inner) f32 accum
    qkv_b = qkv.astype(bf16)                          # single cast for all heads

    # Per-head score / softmax / PV on lane-slice views of the fused QKV result.
    # TODO(synk): at realistic shapes replace the materialized (N, N) per-head scores
    #   with a seq-tiled flash-style online softmax.
    o_heads = []
    for h in range(heads):
        q_h = qkv_b[:, h * dim_head:(h + 1) * dim_head]
        k_h = qkv_b[:, inner + h * dim_head: inner + (h + 1) * dim_head]
        v_h = qkv_b[:, 2 * inner + h * dim_head: 2 * inner + (h + 1) * dim_head]
        s = jnp.einsum('nd,md->nm', q_h, k_h, preferred_element_type=f32)  # (N, N)
        s = s - jnp.max(s, axis=-1, keepdims=True)
        e = jnp.exp(s)
        p = e * pl.reciprocal(jnp.sum(e, axis=-1, keepdims=True), approx=True)
        o_heads.append(jnp.dot(p.astype(bf16), v_h, preferred_element_type=f32))
    o_cat = jnp.concatenate(o_heads, axis=-1)         # (N, inner) head-concat

    attn = jnp.dot(o_cat.astype(bf16), wout_ref[...],
                   preferred_element_type=f32) + bo   # single lane-dense out proj
    x = attn + x                                      # attention residual

    # ----- PreNorm -> FeedForward (GELU MLP), + residual -----
    xn2 = _layernorm(x, g2, b2)
    h1 = jnp.dot(xn2.astype(bf16), w1_ref[...], preferred_element_type=f32) + bb1
    h1 = _gelu_tanh(h1)
    y = jnp.dot(h1.astype(bf16), w2_ref[...], preferred_element_type=f32) + bb2
    x = y + x                                         # FF residual

    carry_ref[...] = x                                # carry to next layer step

    @pl.when(l == pl.num_programs(1) - 1)
    def _():
        o_ref[...] = x.astype(o_ref.dtype)            # single HBM writeback per batch


# ---------------- wrapper -------------------------------------------------------------


@functools.partial(jax.jit, static_argnames=("heads", "dim_head"))
def transformer_forward(x, sp, *, heads, dim_head):
    B, N, D = x.shape
    L = sp["wqkv"].shape[0]
    inner = heads * dim_head
    mlp = sp["w1"].shape[-1]

    kernel = functools.partial(_layer_stack_kernel, heads=heads, dim_head=dim_head)
    return pl.pallas_call(
        kernel,
        out_shape=jax.ShapeDtypeStruct((B, N, D), x.dtype),
        grid=(B, L),  # batch parallel (megacore), layer = carried/"arbitrary" axis
        in_specs=[
            pl.BlockSpec((None, N, D), lambda b, l: (b, 0, 0)),          # activations
            pl.BlockSpec((None, D, 3 * inner), lambda b, l: (l, 0, 0)),  # wqkv  bf16
            pl.BlockSpec((None, inner, D), lambda b, l: (l, 0, 0)),      # wout  bf16
            pl.BlockSpec((None, D, mlp), lambda b, l: (l, 0, 0)),        # w1    bf16
            pl.BlockSpec((None, mlp, D), lambda b, l: (l, 0, 0)),        # w2    bf16
            pl.BlockSpec((None, 6, D), lambda b, l: (l, 0, 0)),          # packed D-vectors
            pl.BlockSpec((None, 1, mlp), lambda b, l: (l, 0, 0)),        # FF bias1
        ],
        out_specs=pl.BlockSpec((None, N, D), lambda b, l: (b, 0, 0)),
        scratch_shapes=[pltpu.VMEM((N, D), jnp.float32)],  # activation carry across layers
        compiler_params=pltpu.CompilerParams(
            dimension_semantics=("parallel", "arbitrary"),
            # Tiny working set; fits comfortably under v7x's 64 MiB physical VMEM.
            vmem_limit_bytes=32 * 1024 * 1024,
        ),
    )(x, sp["wqkv"], sp["wout"], sp["w1"], sp["w2"], sp["vd"], sp["vm"])


# ---------------- host-side parameter preparation -------------------------------------


def prepare_stacked_params(layers, heads, dim_head):
    """Canonical f32 (torch-like) params -> stacked (L, ...) kernel-ready arrays."""
    scale = dim_head ** -0.5
    bf = lambda a: a.astype(jnp.bfloat16)
    wqkv_l, wout_l, w1_l, w2_l, vd_l, vm_l = [], [], [], [], [], []
    for attn_p, ff_p in layers:
        wq, wk, wv = jnp.split(attn_p["wqkv"], 3, axis=-1)          # each (D, inner)
        wqkv_l.append(bf(jnp.concatenate([wq * scale, wk, wv], axis=-1)))  # (D, 3*inner)
        wout_l.append(bf(attn_p["wout"]))                           # (inner, D) native
        w1_l.append(bf(ff_p["w1"]))                                 # (D, mlp)
        w2_l.append(bf(ff_p["w2"]))                                 # (mlp, D)
        vd_l.append(jnp.concatenate(                                # (6, D) f32
            [attn_p["gamma"], attn_p["beta"], attn_p["bout"],
             ff_p["gamma"], ff_p["beta"], ff_p["b2"]], axis=0))
        vm_l.append(ff_p["b1"])                                     # (1, mlp) f32
    return dict(
        wqkv=jnp.stack(wqkv_l), wout=jnp.stack(wout_l),
        w1=jnp.stack(w1_l), w2=jnp.stack(w2_l),
        vd=jnp.stack(vd_l), vm=jnp.stack(vm_l),
    )


# ---------------- pure-JAX reference (torch semantics, f32, erf GELU) -----------------


def transformer_reference(x, layers, heads, dim_head):
    B, N, D = x.shape
    for attn_p, ff_p in layers:
        xn = _layernorm(x, attn_p["gamma"], attn_p["beta"])
        qkv = xn @ attn_p["wqkv"]
        q, k, v = jnp.split(qkv, 3, axis=-1)
        split = lambda t: t.reshape(B, N, heads, dim_head).transpose(0, 2, 1, 3)
        q, k, v = split(q), split(k), split(v)
        dots = jnp.einsum("bhid,bhjd->bhij", q, k) * (dim_head ** -0.5)
        a = jax.nn.softmax(dots, axis=-1)
        o = jnp.einsum("bhij,bhjd->bhid", a, v).transpose(0, 2, 1, 3).reshape(B, N, -1)
        x = o @ attn_p["wout"] + attn_p["bout"] + x
        xn = _layernorm(x, ff_p["gamma"], ff_p["beta"])
        h = _gelu_erf(xn @ ff_p["w1"] + ff_p["b1"])
        x = h @ ff_p["w2"] + ff_p["b2"] + x
    return x


# ---------------- parameter init -------------------------------------------------------


def init_params(key, depth, dim, heads, dim_head, mlp_dim):
    inner = heads * dim_head
    layers = []
    for _ in range(depth):
        key, k0, k1, k2, k3, k4, k5, k6 = jax.random.split(key, 8)
        attn_p = dict(
            gamma=jnp.ones((1, dim), jnp.float32),
            beta=jnp.zeros((1, dim), jnp.float32),
            wqkv=0.02 * jax.random.normal(k0, (dim, 3 * inner), jnp.float32),
            wout=0.02 * jax.random.normal(k1, (inner, dim), jnp.float32),
            bout=0.02 * jax.random.normal(k2, (1, dim), jnp.float32),
        )
        ff_p = dict(
            gamma=jnp.ones((1, dim), jnp.float32),
            beta=jnp.zeros((1, dim), jnp.float32),
            w1=0.02 * jax.random.normal(k3, (dim, mlp_dim), jnp.float32),
            b1=0.02 * jax.random.normal(k4, (1, mlp_dim), jnp.float32),
            w2=0.02 * jax.random.normal(k5, (mlp_dim, dim), jnp.float32),
            b2=0.02 * jax.random.normal(k6, (1, dim), jnp.float32),
        )
        layers.append((attn_p, ff_p))
    return layers


# ---------------- main ------------------------------------------------------------------


if __name__ == "__main__":
    B, N, DIM = 2, 8, 32          # batch, seq, model dim
    DEPTH, HEADS, DIM_HEAD, MLP = 2, 4, 8, 64

    key = jax.random.PRNGKey(0)
    key, kx = jax.random.split(key)
    x = jax.random.normal(kx, (B, N, DIM), jnp.float32)
    layers = init_params(key, DEPTH, DIM, HEADS, DIM_HEAD, MLP)
    stacked = prepare_stacked_params(layers, HEADS, DIM_HEAD)

    out = jax.block_until_ready(
        transformer_forward(x, stacked, heads=HEADS, dim_head=DIM_HEAD))
    ref = jax.block_until_ready(transformer_reference(x, layers, HEADS, DIM_HEAD))

    # Tolerance loosened vs the f32 reference: bf16 MXU operands / bf16 weight
    # storage, approx reciprocal in softmax, and tanh-approx GELU.
    np.testing.assert_allclose(np.asarray(out), np.asarray(ref), rtol=1e-2, atol=1e-2)

    print("KERNEL_OK")
</pallas_src>

<mosaic_0001>
module attributes {stable_mosaic.version = 11 : i64} {
  func.func @_layer_stack_kernel(%arg0: i32, %arg1: i32, %arg2: memref<1x8x32xf32, #tpu.memory_space<vmem>>, %arg3: memref<1x32x96xbf16, #tpu.memory_space<vmem>>, %arg4: memref<1x32x32xbf16, #tpu.memory_space<vmem>>, %arg5: memref<1x32x64xbf16, #tpu.memory_space<vmem>>, %arg6: memref<1x64x32xbf16, #tpu.memory_space<vmem>>, %arg7: memref<1x6x32xf32, #tpu.memory_space<vmem>>, %arg8: memref<1x1x64xf32, #tpu.memory_space<vmem>>, %arg9: memref<1x8x32xf32, #tpu.memory_space<vmem>>, %arg10: memref<8x32xf32, #tpu.memory_space<vmem>>) attributes {dimension_semantics = [#tpu.dimension_semantics<parallel>, #tpu.dimension_semantics<arbitrary>], iteration_bounds = array<i64: 2, 2>, scalar_prefetch = 0 : i64, scratch_operands = 1 : i64, tpu.core_type = #tpu.core_type<tc>, window_params = [{transform_indices = @transform_0, window_bounds = array<i64: 1, 8, 32>}, {transform_indices = @transform_1, window_bounds = array<i64: 1, 32, 96>}, {transform_indices = @transform_2, window_bounds = array<i64: 1, 32, 32>}, {transform_indices = @transform_3, window_bounds = array<i64: 1, 32, 64>}, {transform_indices = @transform_4, window_bounds = array<i64: 1, 64, 32>}, {transform_indices = @transform_5, window_bounds = array<i64: 1, 6, 32>}, {transform_indices = @transform_6, window_bounds = array<i64: 1, 1, 64>}, {transform_indices = @transform_7, window_bounds = array<i64: 1, 8, 32>}]} {
    %c0_i32 = arith.constant 0 : i32
    %0 = arith.cmpi eq, %arg1, %c0_i32 : i32
    %1 = arith.extui %0 : i1 to i32
    %c0_i32_0 = arith.constant 0 : i32
    %2 = arith.cmpi ne, %1, %c0_i32_0 : i32
    scf.if %2 {
      %c0_56 = arith.constant 0 : index
      %c0_57 = arith.constant 0 : index
      %c0_58 = arith.constant 0 : index
      %165 = vector.load %arg2[%c0_56, %c0_57, %c0_58] : memref<1x8x32xf32, #tpu.memory_space<vmem>>, vector<1x8x32xf32>
      %166 = vector.shape_cast %165 : vector<1x8x32xf32> to vector<8x32xf32>
      %c0_59 = arith.constant 0 : index
      %c0_60 = arith.constant 0 : index
      %167 = vector.load %arg10[%c0_59, %c0_60] : memref<8x32xf32, #tpu.memory_space<vmem>>, vector<8x32xf32>
      tpu.vector_store %arg10[%c0_59, %c0_60], %166 {strides = array<i32>} : memref<8x32xf32, #tpu.memory_space<vmem>>, vector<8x32xf32>,
    } else {
    }
    %c0 = arith.constant 0 : index
    %c0_1 = arith.constant 0 : index
    %3 = vector.load %arg10[%c0, %c0_1] : memref<8x32xf32, #tpu.memory_space<vmem>>, vector<8x32xf32>
    %c0_2 = arith.constant 0 : index
    %c0_3 = arith.constant 0 : index
    %c0_4 = arith.constant 0 : index
    %4 = vector.load %arg7[%c0_2, %c0_3, %c0_4] : memref<1x6x32xf32, #tpu.memory_space<vmem>>, vector<1x6x32xf32>
    %5 = vector.shape_cast %4 : vector<1x6x32xf32> to vector<6x32xf32>
    %6 = vector.extract_strided_slice %5 {offsets = [0, 0], sizes = [1, 32], strides = [1, 1]} : vector<6x32xf32> to vector<1x32xf32>
    %7 = vector.extract_strided_slice %5 {offsets = [1, 0], sizes = [1, 32], strides = [1, 1]} : vector<6x32xf32> to vector<1x32xf32>
    %8 = vector.extract_strided_slice %5 {offsets = [2, 0], sizes = [1, 32], strides = [1, 1]} : vector<6x32xf32> to vector<1x32xf32>
    %9 = vector.extract_strided_slice %5 {offsets = [3, 0], sizes = [1, 32], strides = [1, 1]} : vector<6x32xf32> to vector<1x32xf32>
    %10 = vector.extract_strided_slice %5 {offsets = [4, 0], sizes = [1, 32], strides = [1, 1]} : vector<6x32xf32> to vector<1x32xf32>
    %11 = vector.extract_strided_slice %5 {offsets = [5, 0], sizes = [1, 32], strides = [1, 1]} : vector<6x32xf32> to vector<1x32xf32>
    %c0_5 = arith.constant 0 : index
    %c0_6 = arith.constant 0 : index
    %c0_7 = arith.constant 0 : index
    %12 = vector.load %arg8[%c0_5, %c0_6, %c0_7] : memref<1x1x64xf32, #tpu.memory_space<vmem>>, vector<1x1x64xf32>
    %13 = vector.shape_cast %12 : vector<1x1x64xf32> to vector<1x64xf32>
    %cst = arith.constant dense<0.000000e+00> : vector<8xf32>
    %14 = vector.multi_reduction <add>, %3, %cst [1] : vector<8x32xf32> to vector<8xf32>
    %15 = vector.shape_cast %14 : vector<8xf32> to vector<8x1xf32>
    %cst_8 = arith.constant 3.200000e+01 : f32
    %16 = vector.broadcast %cst_8 : f32 to vector<8x1xf32>
    %17 = arith.divf %15, %16 : vector<8x1xf32>
    %18 = vector.broadcast %17 : vector<8x1xf32> to vector<8x32xf32>
    %19 = arith.subf %3, %18 : vector<8x32xf32>
    %20 = arith.mulf %19, %19 : vector<8x32xf32>
    %cst_9 = arith.constant dense<0.000000e+00> : vector<8xf32>
    %21 = vector.multi_reduction <add>, %20, %cst_9 [1] : vector<8x32xf32> to vector<8xf32>
    %22 = vector.shape_cast %21 : vector<8xf32> to vector<8x1xf32>
    %cst_10 = arith.constant 3.200000e+01 : f32
    %23 = vector.broadcast %cst_10 : f32 to vector<8x1xf32>
    %24 = arith.divf %22, %23 : vector<8x1xf32>
    %25 = vector.broadcast %17 : vector<8x1xf32> to vector<8x32xf32>
    %26 = arith.subf %3, %25 : vector<8x32xf32>
    %cst_11 = arith.constant 9.99999974E-6 : f32
    %27 = vector.broadcast %cst_11 : f32 to vector<8x1xf32>
    %28 = arith.addf %24, %27 : vector<8x1xf32>
    %29 = math.rsqrt %28 : vector<8x1xf32>
    %30 = vector.broadcast %29 : vector<8x1xf32> to vector<8x32xf32>
    %31 = arith.mulf %26, %30 : vector<8x32xf32>
    %32 = vector.broadcast %6 : vector<1x32xf32> to vector<8x32xf32>
    %33 = arith.mulf %31, %32 : vector<8x32xf32>
    %34 = vector.broadcast %7 : vector<1x32xf32> to vector<8x32xf32>
    %35 = arith.addf %33, %34 : vector<8x32xf32>
    %36 = arith.truncf %35 : vector<8x32xf32> to vector<8x32xbf16>
    %c0_12 = arith.constant 0 : index
    %c0_13 = arith.constant 0 : index
    %c0_14 = arith.constant 0 : index
    %37 = vector.load %arg3[%c0_12, %c0_13, %c0_14] : memref<1x32x96xbf16, #tpu.memory_space<vmem>>, vector<1x32x96xbf16>
    %38 = vector.shape_cast %37 : vector<1x32x96xbf16> to vector<32x96xbf16>
    %cst_15 = arith.constant dense<0.000000e+00> : vector<8x96xf32>
    %39 = tpu.matmul %36, %38, %cst_15 {dimension_numbers = #tpu.dot_dimension_numbers<[1], [0], [0], [1], [0, 0, 1, 1], [], []>} : vector<8x32xbf16>, vector<32x96xbf16>, vector<8x96xf32> -> vector<8x96xf32>
    %40 = arith.truncf %39 : vector<8x96xf32> to vector<8x96xbf16>
    %41 = vector.extract_strided_slice %40 {offsets = [0, 0], sizes = [8, 8], strides = [1, 1]} : vector<8x96xbf16> to vector<8x8xbf16>
    %42 = vector.extract_strided_slice %40 {offsets = [0, 32], sizes = [8, 8], strides = [1, 1]} : vector<8x96xbf16> to vector<8x8xbf16>
    %43 = vector.extract_strided_slice %40 {offsets = [0, 64], sizes = [8, 8], strides = [1, 1]} : vector<8x96xbf16> to vector<8x8xbf16>
    "tpu.trace_start"() <{level = 10 : i32, message = "nd,md->nm"}> : () -> ()
    %cst_16 = arith.constant dense<0.000000e+00> : vector<8x8xf32>
    %44 = tpu.matmul %41, %42, %cst_16 {dimension_numbers = #tpu.dot_dimension_numbers<[1], [1], [0], [0], [0, 0, 1, 0], [], []>} : vector<8x8xbf16>, vector<8x8xbf16>, vector<8x8xf32> -> vector<8x8xf32>
    "tpu.trace_stop"() : () -> ()
    %cst_17 = arith.constant dense<0xFF800000> : vector<8xf32>
    %45 = vector.multi_reduction <maximumf>, %44, %cst_17 [1] : vector<8x8xf32> to vector<8xf32>
    %46 = vector.shape_cast %45 : vector<8xf32> to vector<8x1xf32>
    %47 = vector.broadcast %46 : vector<8x1xf32> to vector<8x8xf32>
    %48 = arith.subf %44, %47 : vector<8x8xf32>
    %49 = math.exp %48 : vector<8x8xf32>
    %cst_18 = arith.constant dense<0.000000e+00> : vector<8xf32>
    %50 = vector.multi_reduction <add>, %49, %cst_18 [1] : vector<8x8xf32> to vector<8xf32>
    %51 = vector.shape_cast %50 : vector<8xf32> to vector<8x1xf32>
    %52 = tpu.reciprocal %51 {approx = true} : vector<8x1xf32> -> vector<8x1xf32>
    %53 = vector.broadcast %52 : vector<8x1xf32> to vector<8x8xf32>
    %54 = arith.mulf %49, %53 : vector<8x8xf32>
    %55 = arith.truncf %54 : vector<8x8xf32> to vector<8x8xbf16>
    %cst_19 = arith.constant dense<0.000000e+00> : vector<8x8xf32>
    %56 = tpu.matmul %55, %43, %cst_19 {dimension_numbers = #tpu.dot_dimension_numbers<[1], [0], [0], [1], [0, 0, 1, 1], [], []>} : vector<8x8xbf16>, vector<8x8xbf16>, vector<8x8xf32> -> vector<8x8xf32>
    %57 = vector.extract_strided_slice %40 {offsets = [0, 8], sizes = [8, 8], strides = [1, 1]} : vector<8x96xbf16> to vector<8x8xbf16>
    %58 = vector.extract_strided_slice %40 {offsets = [0, 40], sizes = [8, 8], strides = [1, 1]} : vector<8x96xbf16> to vector<8x8xbf16>
    %59 = vector.extract_strided_slice %40 {offsets = [0, 72], sizes = [8, 8], strides = [1, 1]} : vector<8x96xbf16> to vector<8x8xbf16>
    "tpu.trace_start"() <{level = 10 : i32, message = "nd,md->nm"}> : () -> ()
    %cst_20 = arith.constant dense<0.000000e+00> : vector<8x8xf32>
    %60 = tpu.matmul %57, %58, %cst_20 {dimension_numbers = #tpu.dot_dimension_numbers<[1], [1], [0], [0], [0, 0, 1, 0], [], []>} : vector<8x8xbf16>, vector<8x8xbf16>, vector<8x8xf32> -> vector<8x8xf32>
    "tpu.trace_stop"() : () -> ()
    %cst_21 = arith.constant dense<0xFF800000> : vector<8xf32>
    %61 = vector.multi_reduction <maximumf>, %60, %cst_21 [1] : vector<8x8xf32> to vector<8xf32>
    %62 = vector.shape_cast %61 : vector<8xf32> to vector<8x1xf32>
    %63 = vector.broadcast %62 : vector<8x1xf32> to vector<8x8xf32>
    %64 = arith.subf %60, %63 : vector<8x8xf32>
    %65 = math.exp %64 : vector<8x8xf32>
    %cst_22 = arith.constant dense<0.000000e+00> : vector<8xf32>
    %66 = vector.multi_reduction <add>, %65, %cst_22 [1] : vector<8x8xf32> to vector<8xf32>
    %67 = vector.shape_cast %66 : vector<8xf32> to vector<8x1xf32>
    %68 = tpu.reciprocal %67 {approx = true} : vector<8x1xf32> -> vector<8x1xf32>
    %69 = vector.broadcast %68 : vector<8x1xf32> to vector<8x8xf32>
    %70 = arith.mulf %65, %69 : vector<8x8xf32>
    %71 = arith.truncf %70 : vector<8x8xf32> to vector<8x8xbf16>
    %cst_23 = arith.constant dense<0.000000e+00> : vector<8x8xf32>
    %72 = tpu.matmul %71, %59, %cst_23 {dimension_numbers = #tpu.dot_dimension_numbers<[1], [0], [0], [1], [0, 0, 1, 1], [], []>} : vector<8x8xbf16>, vector<8x8xbf16>, vector<8x8xf32> -> vector<8x8xf32>
    %73 = vector.extract_strided_slice %40 {offsets = [0, 16], sizes = [8, 8], strides = [1, 1]} : vector<8x96xbf16> to vector<8x8xbf16>
    %74 = vector.extract_strided_slice %40 {offsets = [0, 48], sizes = [8, 8], strides = [1, 1]} : vector<8x96xbf16> to vector<8x8xbf16>
    %75 = vector.extract_strided_slice %40 {offsets = [0, 80], sizes = [8, 8], strides = [1, 1]} : vector<8x96xbf16> to vector<8x8xbf16>
    "tpu.trace_start"() <{level = 10 : i32, message = "nd,md->nm"}> : () -> ()
    %cst_24 = arith.constant dense<0.000000e+00> : vector<8x8xf32>
    %76 = tpu.matmul %73, %74, %cst_24 {dimension_numbers = #tpu.dot_dimension_numbers<[1], [1], [0], [0], [0, 0, 1, 0], [], []>} : vector<8x8xbf16>, vector<8x8xbf16>, vector<8x8xf32> -> vector<8x8xf32>
    "tpu.trace_stop"() : () -> ()
    %cst_25 = arith.constant dense<0xFF800000> : vector<8xf32>
    %77 = vector.multi_reduction <maximumf>, %76, %cst_25 [1] : vector<8x8xf32> to vector<8xf32>
    %78 = vector.shape_cast %77 : vector<8xf32> to vector<8x1xf32>
    %79 = vector.broadcast %78 : vector<8x1xf32> to vector<8x8xf32>
    %80 = arith.subf %76, %79 : vector<8x8xf32>
    %81 = math.exp %80 : vector<8x8xf32>
    %cst_26 = arith.constant dense<0.000000e+00> : vector<8xf32>
    %82 = vector.multi_reduction <add>, %81, %cst_26 [1] : vector<8x8xf32> to vector<8xf32>
    %83 = vector.shape_cast %82 : vector<8xf32> to vector<8x1xf32>
    %84 = tpu.reciprocal %83 {approx = true} : vector<8x1xf32> -> vector<8x1xf32>
    %85 = vector.broadcast %84 : vector<8x1xf32> to vector<8x8xf32>
    %86 = arith.mulf %81, %85 : vector<8x8xf32>
    %87 = arith.truncf %86 : vector<8x8xf32> to vector<8x8xbf16>
    %cst_27 = arith.constant dense<0.000000e+00> : vector<8x8xf32>
    %88 = tpu.matmul %87, %75, %cst_27 {dimension_numbers = #tpu.dot_dimension_numbers<[1], [0], [0], [1], [0, 0, 1, 1], [], []>} : vector<8x8xbf16>, vector<8x8xbf16>, vector<8x8xf32> -> vector<8x8xf32>
    %89 = vector.extract_strided_slice %40 {offsets = [0, 24], sizes = [8, 8], strides = [1, 1]} : vector<8x96xbf16> to vector<8x8xbf16>
    %90 = vector.extract_strided_slice %40 {offsets = [0, 56], sizes = [8, 8], strides = [1, 1]} : vector<8x96xbf16> to vector<8x8xbf16>
    %91 = vector.extract_strided_slice %40 {offsets = [0, 88], sizes = [8, 8], strides = [1, 1]} : vector<8x96xbf16> to vector<8x8xbf16>
    "tpu.trace_start"() <{level = 10 : i32, message = "nd,md->nm"}> : () -> ()
    %cst_28 = arith.constant dense<0.000000e+00> : vector<8x8xf32>
    %92 = tpu.matmul %89, %90, %cst_28 {dimension_numbers = #tpu.dot_dimension_numbers<[1], [1], [0], [0], [0, 0, 1, 0], [], []>} : vector<8x8xbf16>, vector<8x8xbf16>, vector<8x8xf32> -> vector<8x8xf32>
    "tpu.trace_stop"() : () -> ()
    %cst_29 = arith.constant dense<0xFF800000> : vector<8xf32>
    %93 = vector.multi_reduction <maximumf>, %92, %cst_29 [1] : vector<8x8xf32> to vector<8xf32>
    %94 = vector.shape_cast %93 : vector<8xf32> to vector<8x1xf32>
    %95 = vector.broadcast %94 : vector<8x1xf32> to vector<8x8xf32>
    %96 = arith.subf %92, %95 : vector<8x8xf32>
    %97 = math.exp %96 : vector<8x8xf32>
    %cst_30 = arith.constant dense<0.000000e+00> : vector<8xf32>
    %98 = vector.multi_reduction <add>, %97, %cst_30 [1] : vector<8x8xf32> to vector<8xf32>
    %99 = vector.shape_cast %98 : vector<8xf32> to vector<8x1xf32>
    %100 = tpu.reciprocal %99 {approx = true} : vector<8x1xf32> -> vector<8x1xf32>
    %101 = vector.broadcast %100 : vector<8x1xf32> to vector<8x8xf32>
    %102 = arith.mulf %97, %101 : vector<8x8xf32>
    %103 = arith.truncf %102 : vector<8x8xf32> to vector<8x8xbf16>
    %cst_31 = arith.constant dense<0.000000e+00> : vector<8x8xf32>
    %104 = tpu.matmul %103, %91, %cst_31 {dimension_numbers = #tpu.dot_dimension_numbers<[1], [0], [0], [1], [0, 0, 1, 1], [], []>} : vector<8x8xbf16>, vector<8x8xbf16>, vector<8x8xf32> -> vector<8x8xf32>
    %105 = tpu.concatenate %56, %72, %88, %104 in 1 : vector<8x8xf32>, vector<8x8xf32>, vector<8x8xf32>, vector<8x8xf32> -> vector<8x32xf32>
    %106 = arith.truncf %105 : vector<8x32xf32> to vector<8x32xbf16>
    %c0_32 = arith.constant 0 : index
    %c0_33 = arith.constant 0 : index
    %c0_34 = arith.constant 0 : index
    %107 = vector.load %arg4[%c0_32, %c0_33, %c0_34] : memref<1x32x32xbf16, #tpu.memory_space<vmem>>, vector<1x32x32xbf16>
    %108 = vector.shape_cast %107 : vector<1x32x32xbf16> to vector<32x32xbf16>
    %cst_35 = arith.constant dense<0.000000e+00> : vector<8x32xf32>
    %109 = tpu.matmul %106, %108, %cst_35 {dimension_numbers = #tpu.dot_dimension_numbers<[1], [0], [0], [1], [0, 0, 1, 1], [], []>} : vector<8x32xbf16>, vector<32x32xbf16>, vector<8x32xf32> -> vector<8x32xf32>
    %110 = vector.broadcast %8 : vector<1x32xf32> to vector<8x32xf32>
    %111 = arith.addf %109, %110 : vector<8x32xf32>
    %112 = arith.addf %111, %3 : vector<8x32xf32>
    %cst_36 = arith.constant dense<0.000000e+00> : vector<8xf32>
    %113 = vector.multi_reduction <add>, %112, %cst_36 [1] : vector<8x32xf32> to vector<8xf32>
    %114 = vector.shape_cast %113 : vector<8xf32> to vector<8x1xf32>
    %cst_37 = arith.constant 3.200000e+01 : f32
    %115 = vector.broadcast %cst_37 : f32 to vector<8x1xf32>
    %116 = arith.divf %114, %115 : vector<8x1xf32>
    %117 = vector.broadcast %116 : vector<8x1xf32> to vector<8x32xf32>
    %118 = arith.subf %112, %117 : vector<8x32xf32>
    %119 = arith.mulf %118, %118 : vector<8x32xf32>
    %cst_38 = arith.constant dense<0.000000e+00> : vector<8xf32>
    %120 = vector.multi_reduction <add>, %119, %cst_38 [1] : vector<8x32xf32> to vector<8xf32>
    %121 = vector.shape_cast %120 : vector<8xf32> to vector<8x1xf32>
    %cst_39 = arith.constant 3.200000e+01 : f32
    %122 = vector.broadcast %cst_39 : f32 to vector<8x1xf32>
    %123 = arith.divf %121, %122 : vector<8x1xf32>
    %124 = vector.broadcast %116 : vector<8x1xf32> to vector<8x32xf32>
    %125 = arith.subf %112, %124 : vector<8x32xf32>
    %cst_40 = arith.constant 9.99999974E-6 : f32
    %126 = vector.broadcast %cst_40 : f32 to vector<8x1xf32>
    %127 = arith.addf %123, %126 : vector<8x1xf32>
    %128 = math.rsqrt %127 : vector<8x1xf32>
    %129 = vector.broadcast %128 : vector<8x1xf32> to vector<8x32xf32>
    %130 = arith.mulf %125, %129 : vector<8x32xf32>
    %131 = vector.broadcast %9 : vector<1x32xf32> to vector<8x32xf32>
    %132 = arith.mulf %130, %131 : vector<8x32xf32>
    %133 = vector.broadcast %10 : vector<1x32xf32> to vector<8x32xf32>
    %134 = arith.addf %132, %133 : vector<8x32xf32>
    %135 = arith.truncf %134 : vector<8x32xf32> to vector<8x32xbf16>
    %c0_41 = arith.constant 0 : index
    %c0_42 = arith.constant 0 : index
    %c0_43 = arith.constant 0 : index
    %136 = vector.load %arg5[%c0_41, %c0_42, %c0_43] : memref<1x32x64xbf16, #tpu.memory_space<vmem>>, vector<1x32x64xbf16>
    %137 = vector.shape_cast %136 : vector<1x32x64xbf16> to vector<32x64xbf16>
    %cst_44 = arith.constant dense<0.000000e+00> : vector<8x64xf32>
    %138 = tpu.matmul %135, %137, %cst_44 {dimension_numbers = #tpu.dot_dimension_numbers<[1], [0], [0], [1], [0, 0, 1, 1], [], []>} : vector<8x32xbf16>, vector<32x64xbf16>, vector<8x64xf32> -> vector<8x64xf32>
    %139 = vector.broadcast %13 : vector<1x64xf32> to vector<8x64xf32>
    %140 = arith.addf %138, %139 : vector<8x64xf32>
    %cst_45 = arith.constant 5.000000e-01 : f32
    %141 = vector.broadcast %cst_45 : f32 to vector<8x64xf32>
    %142 = arith.mulf %141, %140 : vector<8x64xf32>
    %cst_46 = arith.constant 4.471500e-02 : f32
    %143 = vector.broadcast %cst_46 : f32 to vector<8x64xf32>
    %144 = arith.mulf %143, %140 : vector<8x64xf32>
    %145 = arith.mulf %144, %140 : vector<8x64xf32>
    %146 = arith.mulf %145, %140 : vector<8x64xf32>
    %147 = arith.addf %140, %146 : vector<8x64xf32>
    %cst_47 = arith.constant 0.797884583 : f32
    %148 = vector.broadcast %cst_47 : f32 to vector<8x64xf32>
    %149 = arith.mulf %148, %147 : vector<8x64xf32>
    %150 = math.tanh %149 : vector<8x64xf32>
    %cst_48 = arith.constant 1.000000e+00 : f32
    %151 = vector.broadcast %cst_48 : f32 to vector<8x64xf32>
    %152 = arith.addf %151, %150 : vector<8x64xf32>
    %153 = arith.mulf %142, %152 : vector<8x64xf32>
    %154 = arith.truncf %153 : vector<8x64xf32> to vector<8x64xbf16>
    %c0_49 = arith.constant 0 : index
    %c0_50 = arith.constant 0 : index
    %c0_51 = arith.constant 0 : index
    %155 = vector.load %arg6[%c0_49, %c0_50, %c0_51] : memref<1x64x32xbf16, #tpu.memory_space<vmem>>, vector<1x64x32xbf16>
    %156 = vector.shape_cast %155 : vector<1x64x32xbf16> to vector<64x32xbf16>
    %cst_52 = arith.constant dense<0.000000e+00> : vector<8x32xf32>
    %157 = tpu.matmul %154, %156, %cst_52 {dimension_numbers = #tpu.dot_dimension_numbers<[1], [0], [0], [1], [0, 0, 1, 1], [], []>} : vector<8x64xbf16>, vector<64x32xbf16>, vector<8x32xf32> -> vector<8x32xf32>
    %158 = vector.broadcast %11 : vector<1x32xf32> to vector<8x32xf32>
    %159 = arith.addf %157, %158 : vector<8x32xf32>
    %160 = arith.addf %159, %112 : vector<8x32xf32>
    %c0_53 = arith.constant 0 : index
    %c0_54 = arith.constant 0 : index
    %161 = vector.load %arg10[%c0_53, %c0_54] : memref<8x32xf32, #tpu.memory_space<vmem>>, vector<8x32xf32>
    tpu.vector_store %arg10[%c0_53, %c0_54], %160 {strides = array<i32>} : memref<8x32xf32, #tpu.memory_space<vmem>>, vector<8x32xf32>,
    %c1_i32 = arith.constant 1 : i32
    %162 = arith.cmpi eq, %arg1, %c1_i32 : i32
    %163 = arith.extui %162 : i1 to i32
    %c0_i32_55 = arith.constant 0 : i32
    %164 = arith.cmpi ne, %163, %c0_i32_55 : i32
    scf.if %164 {
      %c0_56 = arith.constant 0 : index
      %c0_57 = arith.constant 0 : index
      %c0_58 = arith.constant 0 : index
      %165 = vector.load %arg9[%c0_56, %c0_57, %c0_58] : memref<1x8x32xf32, #tpu.memory_space<vmem>>, vector<1x8x32xf32>
      %166 = vector.shape_cast %165 : vector<1x8x32xf32> to vector<8x32xf32>
      %167 = vector.shape_cast %160 : vector<8x32xf32> to vector<1x8x32xf32>
      tpu.vector_store %arg9[%c0_56, %c0_57, %c0_58], %167 {strides = array<i32>} : memref<1x8x32xf32, #tpu.memory_space<vmem>>, vector<1x8x32xf32>,
    } else {
    }
    return
  }
  func.func @transform_0(%arg0: i32, %arg1: i32) -> (i32, i32, i32) {
    %c0_i32 = arith.constant 0 : i32
    %c0_i32_0 = arith.constant 0 : i32
    %c0_i32_1 = arith.constant 0 : i32
    return %arg0, %c0_i32, %c0_i32_0 : i32, i32, i32
  }
  func.func @transform_1(%arg0: i32, %arg1: i32) -> (i32, i32, i32) {
    %c0_i32 = arith.constant 0 : i32
    %c0_i32_0 = arith.constant 0 : i32
    %c0_i32_1 = arith.constant 0 : i32
    return %arg1, %c0_i32, %c0_i32_0 : i32, i32, i32
  }
  func.func @transform_2(%arg0: i32, %arg1: i32) -> (i32, i32, i32) {
    %c0_i32 = arith.constant 0 : i32
    %c0_i32_0 = arith.constant 0 : i32
    %c0_i32_1 = arith.constant 0 : i32
    return %arg1, %c0_i32, %c0_i32_0 : i32, i32, i32
  }
  func.func @transform_3(%arg0: i32, %arg1: i32) -> (i32, i32, i32) {
    %c0_i32 = arith.constant 0 : i32
    %c0_i32_0 = arith.constant 0 : i32
    %c0_i32_1 = arith.constant 0 : i32
    return %arg1, %c0_i32, %c0_i32_0 : i32, i32, i32
  }
  func.func @transform_4(%arg0: i32, %arg1: i32) -> (i32, i32, i32) {
    %c0_i32 = arith.constant 0 : i32
    %c0_i32_0 = arith.constant 0 : i32
    %c0_i32_1 = arith.constant 0 : i32
    return %arg1, %c0_i32, %c0_i32_0 : i32, i32, i32
  }
  func.func @transform_5(%arg0: i32, %arg1: i32) -> (i32, i32, i32) {
    %c0_i32 = arith.constant 0 : i32
    %c0_i32_0 = arith.constant 0 : i32
    %c0_i32_1 = arith.constant 0 : i32
    return %arg1, %c0_i32, %c0_i32_0 : i32, i32, i32
  }
  func.func @transform_6(%arg0: i32, %arg1: i32) -> (i32, i32, i32) {
    %c0_i32 = arith.constant 0 : i32
    %c0_i32_0 = arith.constant 0 : i32
    %c0_i32_1 = arith.constant 0 : i32
    return %arg1, %c0_i32, %c0_i32_0 : i32, i32, i32
  }
  func.func @transform_7(%arg0: i32, %arg1: i32) -> (i32, i32, i32) {
    %c0_i32 = arith.constant 0 : i32
    %c0_i32_0 = arith.constant 0 : i32
    %c0_i32_1 = arith.constant 0 : i32
    return %arg0, %c0_i32, %c0_i32_0 : i32, i32, i32
  }
}

</mosaic_0001>

<llo_original>
// kernel: transformer_forward.1
$region0: #{transformer_forward.1}
  #allocation0 [shape = 'u32[]', space=smem, size = 0x4, offset = 0x4, fixed_abs, tag = 'smem constant byte address 0x4 - core index']
  #allocation1 [shape = 'u32[144,128]{1,0:T(1,128)}', space=vmem, size = 0x12000, scoped, tag = 'internal scratch']
  #allocation2 [shape = 'f32[8,32]{1,0:T(8,128)}', space=vmem, size = 0x1000, scoped, tag = 'scratch operand']
  %s0 = inlined_call_operand.hbm [shape: f32[2,8,32], index: 0, kind: input, shape index: {}]
  %s1 = inlined_call_operand.vmem [shape: bf16[2,32,96], index: 1, kind: input, shape index: {}]
  %s2 = inlined_call_operand.vmem [shape: bf16[2,32,32], index: 2, kind: input, shape index: {}]
  %s3 = inlined_call_operand.vmem [shape: bf16[2,32,64], index: 3, kind: input, shape index: {}]
  %s4 = inlined_call_operand.vmem [shape: bf16[2,64,32], index: 4, kind: input, shape index: {}]
  %s5 = inlined_call_operand.vmem [shape: f32[2,6,32], index: 5, kind: input, shape index: {}]
  %s6 = inlined_call_operand.vmem [shape: f32[2,1,64], index: 6, kind: input, shape index: {}]
  %s7 = inlined_call_operand.hbm [shape: f32[2,8,32], index: 7, kind: output, shape index: {}]
  %s8 = sld [smem:[#allocation0]]
  $region73: #{transformer_forward.1} parent=0
    _
  %s10 = ssub.s32 1, %s8
  %s11 = scalar_select 0, %s10, %s8
  $region1: #{transformer_forward.1} parent=0
    #allocation3 [shape = 'u8[8192]{0}', space=vmem, size = 0x2000, scoped, tag = 'input window, operand 0']
    #allocation4 [shape = 's32[2]{0}', space=sflag, size = 0x8, scoped, tag = 'scoped memory for transformer_forward.1']
    #allocation5 [shape = 's32[2]{0}', space=sflag, size = 0x8, scoped, tag = 'scoped memory for transformer_forward.1']
    #allocation6 [shape = 'u8[8192]{0}', space=vmem, size = 0x2000, scoped, tag = 'output window, operand 0']
    %12 = vsyncpa [#allocation4], 0
    %s13 = scalar_lea.sflag [#allocation4], 1
    %14 = vsyncpa %s13, 0
    %15 = vsyncpa [#allocation5], 0
    %s16 = scalar_lea.sflag [#allocation5], 1
    %17 = vsyncpa %s16, 0
    loop: start=0, step=1, limit=6
    $region2: #{transformer_forward.1} parent=1 // loop_pre_header
      _
    $region3: #{transformer_forward.1} parent=1 // loop_header
      %s19 = sphi 0, %s23
      %p20 = scmp.ge.s32.totalorder %s19, 6
      %s26 = sphi 0, %s38
      %s27 = sphi 0, %s34
      %s28 = sphi 0, %s26
      %s29 = sphi 0, %s27
      %s30 = sphi 0, %s28
      %s31 = sphi 0, %s29
      %s41 = sphi 0, %s43
      %s44 = sphi 0, %s41
      %s45 = sphi 0, %s44
      %s61 = sphi 0, %s45
      %s67 = sphi 0, %s69
      %s70 = sphi 0, %s67
      %s71 = sphi 0, %s70
      %s87 = sphi 0, %s71
      %s93 = sphi 0, %s95
      %s96 = sphi 0, %s93
      %s97 = sphi 0, %s96
      %s113 = sphi 0, %s97
      %s119 = sphi 0, %s121
      %s122 = sphi 0, %s119
      %s123 = sphi 0, %s122
      %s139 = sphi 0, %s123
      %s145 = sphi 0, %s147
      %s148 = sphi 0, %s145
      %s149 = sphi 0, %s148
      %s165 = sphi 0, %s149
      %s171 = sphi 0, %s173
      %s174 = sphi 0, %s171
      %s175 = sphi 0, %s174
      %s191 = sphi 0, %s175
      %s197 = sphi 0, %s199
      %s200 = sphi 0, %s197
      %s201 = sphi 0, %s200
      %s217 = sphi 0, %s201
      %s223 = sphi 0, %s225
      %s226 = sphi 0, %s223
      %s227 = sphi 0, %s226
      %s243 = sphi 0, %s227
    $region4: #{transformer_forward.1} parent=1 // loop_header_branch
      %22 = sbr.rel (%p20) target = $region8
    $region5: #{transformer_forward.1} parent=1 // loop_body
      %s24 = ssub.s32 %s19, 1
      %s25 = ssub.s32 %s19, 2
      %s32 = sadd.s32 1, %s27
      %p33 = scmp.ge.s32.totalorder %s32, 2
      %s34 = scalar_select %p33, 0, %s32
      %s35 = sadd.s32 1, %s26
      %s36 = scalar_select %p33, %s35, %s26
      %p37 = scmp.ge.s32.totalorder %s36, 2
      %s38 = scalar_select %p37, 0, %s36
      %s39 = ssub.s32 %s26, %s38
      %p40 = scmp.eq.s32.totalorder %s39, 0
      %s42 = sadd.s32 %s41, 1
      %s43 = scalar_select %p40, %s41, %s42
      %p46 = pneg %p40
      %p47 = scmp.eq.s32.totalorder %s19, 3
      %p48 = por %p46, %p47
      %p49 = scmp.ne.s32.totalorder %s41, %s44
      %p50 = scmp.eq.s32.totalorder %s19, 0
      %p51 = por %p49, %p50
      %p52 = scmp.ne.s32.totalorder %s41, %s44
      %p53 = scmp.eq.s32.totalorder %s24, 3
      %p54 = por %p52, %p53
      %p55 = scmp.ne.s32.totalorder %s44, %s45
      %p56 = scmp.eq.s32.totalorder %s24, 0
      %p57 = por %p55, %p56
      %p58 = scmp.ne.s32.totalorder %s44, %s45
      %p59 = scmp.eq.s32.totalorder %s25, 3
      %p60 = por %p58, %p59
      %p62 = scmp.ne.s32.totalorder %s45, %s61
      %p63 = scmp.eq.s32.totalorder %s25, 0
      %p64 = por %p62, %p63
      %s65 = ssub.s32 %s27, %s34
      %p66 = scmp.eq.s32.totalorder %s65, 0
      %s68 = sadd.s32 %s67, 1
      %s69 = scalar_select %p66, %s67, %s68
      %p72 = pneg %p66
      %p73 = scmp.eq.s32.totalorder %s19, 3
      %p74 = por %p72, %p73
      %p75 = scmp.ne.s32.totalorder %s67, %s70
      %p76 = scmp.eq.s32.totalorder %s19, 0
      %p77 = por %p75, %p76
      %p78 = scmp.ne.s32.totalorder %s67, %s70
      %p79 = scmp.eq.s32.totalorder %s24, 3
      %p80 = por %p78, %p79
      %p81 = scmp.ne.s32.totalorder %s70, %s71
      %p82 = scmp.eq.s32.totalorder %s24, 0
      %p83 = por %p81, %p82
      %p84 = scmp.ne.s32.totalorder %s70, %s71
      %p85 = scmp.eq.s32.totalorder %s25, 3
      %p86 = por %p84, %p85
      %p88 = scmp.ne.s32.totalorder %s71, %s87
      %p89 = scmp.eq.s32.totalorder %s25, 0
      %p90 = por %p88, %p89
      %s91 = ssub.s32 %s27, %s34
      %p92 = scmp.eq.s32.totalorder %s91, 0
      %s94 = sadd.s32 %s93, 1
      %s95 = scalar_select %p92, %s93, %s94
      %p98 = pneg %p92
      %p99 = scmp.eq.s32.totalorder %s19, 3
      %p100 = por %p98, %p99
      %p101 = scmp.ne.s32.totalorder %s93, %s96
      %p102 = scmp.eq.s32.totalorder %s19, 0
      %p103 = por %p101, %p102
      %p104 = scmp.ne.s32.totalorder %s93, %s96
      %p105 = scmp.eq.s32.totalorder %s24, 3
      %p106 = por %p104, %p105
      %p107 = scmp.ne.s32.totalorder %s96, %s97
      %p108 = scmp.eq.s32.totalorder %s24, 0
      %p109 = por %p107, %p108
      %p110 = scmp.ne.s32.totalorder %s96, %s97
      %p111 = scmp.eq.s32.totalorder %s25, 3
      %p112 = por %p110, %p111
      %p114 = scmp.ne.s32.totalorder %s97, %s113
      %p115 = scmp.eq.s32.totalorder %s25, 0
      %p116 = por %p114, %p115
      %s117 = ssub.s32 %s27, %s34
      %p118 = scmp.eq.s32.totalorder %s117, 0
      %s120 = sadd.s32 %s119, 1
      %s121 = scalar_select %p118, %s119, %s120
      %p124 = pneg %p118
      %p125 = scmp.eq.s32.totalorder %s19, 3
      %p126 = por %p124, %p125
      %p127 = scmp.ne.s32.totalorder %s119, %s122
      %p128 = scmp.eq.s32.totalorder %s19, 0
      %p129 = por %p127, %p128
      %p130 = scmp.ne.s32.totalorder %s119, %s122
      %p131 = scmp.eq.s32.totalorder %s24, 3
      %p132 = por %p130, %p131
      %p133 = scmp.ne.s32.totalorder %s122, %s123
      %p134 = scmp.eq.s32.totalorder %s24, 0
      %p135 = por %p133, %p134
      %p136 = scmp.ne.s32.totalorder %s122, %s123
      %p137 = scmp.eq.s32.totalorder %s25, 3
      %p138 = por %p136, %p137
      %p140 = scmp.ne.s32.totalorder %s123, %s139
      %p141 = scmp.eq.s32.totalorder %s25, 0
      %p142 = por %p140, %p141
      %s143 = ssub.s32 %s27, %s34
      %p144 = scmp.eq.s32.totalorder %s143, 0
      %s146 = sadd.s32 %s145, 1
      %s147 = scalar_select %p144, %s145, %s146
      %p150 = pneg %p144
      %p151 = scmp.eq.s32.totalorder %s19, 3
      %p152 = por %p150, %p151
      %p153 = scmp.ne.s32.totalorder %s145, %s148
      %p154 = scmp.eq.s32.totalorder %s19, 0
      %p155 = por %p153, %p154
      %p156 = scmp.ne.s32.totalorder %s145, %s148
      %p157 = scmp.eq.s32.totalorder %s24, 3
      %p158 = por %p156, %p157
      %p159 = scmp.ne.s32.totalorder %s148, %s149
      %p160 = scmp.eq.s32.totalorder %s24, 0
      %p161 = por %p159, %p160
      %p162 = scmp.ne.s32.totalorder %s148, %s149
      %p163 = scmp.eq.s32.totalorder %s25, 3
      %p164 = por %p162, %p163
      %p166 = scmp.ne.s32.totalorder %s149, %s165
      %p167 = scmp.eq.s32.totalorder %s25, 0
      %p168 = por %p166, %p167
      %s169 = ssub.s32 %s27, %s34
      %p170 = scmp.eq.s32.totalorder %s169, 0
      %s172 = sadd.s32 %s171, 1
      %s173 = scalar_select %p170, %s171, %s172
      %p176 = pneg %p170
      %p177 = scmp.eq.s32.totalorder %s19, 3
      %p178 = por %p176, %p177
      %p179 = scmp.ne.s32.totalorder %s171, %s174
      %p180 = scmp.eq.s32.totalorder %s19, 0
      %p181 = por %p179, %p180
      %p182 = scmp.ne.s32.totalorder %s171, %s174
      %p183 = scmp.eq.s32.totalorder %s24, 3
      %p184 = por %p182, %p183
      %p185 = scmp.ne.s32.totalorder %s174, %s175
      %p186 = scmp.eq.s32.totalorder %s24, 0
      %p187 = por %p185, %p186
      %p188 = scmp.ne.s32.totalorder %s174, %s175
      %p189 = scmp.eq.s32.totalorder %s25, 3
      %p190 = por %p188, %p189
      %p192 = scmp.ne.s32.totalorder %s175, %s191
      %p193 = scmp.eq.s32.totalorder %s25, 0
      %p194 = por %p192, %p193
      %s195 = ssub.s32 %s27, %s34
      %p196 = scmp.eq.s32.totalorder %s195, 0
      %s198 = sadd.s32 %s197, 1
      %s199 = scalar_select %p196, %s197, %s198
      %p202 = pneg %p196
      %p203 = scmp.eq.s32.totalorder %s19, 3
      %p204 = por %p202, %p203
      %p205 = scmp.ne.s32.totalorder %s197, %s200
      %p206 = scmp.eq.s32.totalorder %s19, 0
      %p207 = por %p205, %p206
      %p208 = scmp.ne.s32.totalorder %s197, %s200
      %p209 = scmp.eq.s32.totalorder %s24, 3
      %p210 = por %p208, %p209
      %p211 = scmp.ne.s32.totalorder %s200, %s201
      %p212 = scmp.eq.s32.totalorder %s24, 0
      %p213 = por %p211, %p212
      %p214 = scmp.ne.s32.totalorder %s200, %s201
      %p215 = scmp.eq.s32.totalorder %s25, 3
      %p216 = por %p214, %p215
      %p218 = scmp.ne.s32.totalorder %s201, %s217
      %p219 = scmp.eq.s32.totalorder %s25, 0
      %p220 = por %p218, %p219
      %s221 = ssub.s32 %s26, %s38
      %p222 = scmp.eq.s32.totalorder %s221, 0
      %s224 = sadd.s32 %s223, 1
      %s225 = scalar_select %p222, %s223, %s224
      %p228 = pneg %p222
      %p229 = scmp.eq.s32.totalorder %s19, 3
      %p230 = por %p228, %p229
      %p231 = scmp.ne.s32.totalorder %s223, %s226
      %p232 = scmp.eq.s32.totalorder %s19, 0
      %p233 = por %p231, %p232
      %p234 = scmp.ne.s32.totalorder %s223, %s226
      %p235 = scmp.eq.s32.totalorder %s24, 3
      %p236 = por %p234, %p235
      %p237 = scmp.ne.s32.totalorder %s226, %s227
      %p238 = scmp.eq.s32.totalorder %s24, 0
      %p239 = por %p237, %p238
      %p240 = scmp.ne.s32.totalorder %s226, %s227
      %p241 = scmp.eq.s32.totalorder %s25, 3
      %p242 = por %p240, %p241
      %p244 = scmp.ne.s32.totalorder %s227, %s243
      %p245 = scmp.eq.s32.totalorder %s25, 0
      %p246 = por %p244, %p245
      %p247 = scmp.le.s32.totalorder 1, %s19
      %p248 = scmp.lt.s32.totalorder %s19, 5
      %p249 = pnand %p247, %p248
      %p250 = pneg %p249
      // Predicated region
      $region9: #{transformer_forward.1} parent=5 // pred_check
        _
      $region10: #{transformer_forward.1} parent=5 // pred_check_branch
        %252 = sbr.rel (%p249) target = $region12
      $region11: #{transformer_forward.1} parent=5 // pred_region
        %s253 = ssub.s32 %s19, 1
      $region12: #{transformer_forward.1} parent=5 // pred_fallthru
        _
      %p254 = scmp.lt.s32.totalorder %s19, 4
      // Predicated region
      $region13: #{transformer_forward.1} parent=5 // pred_check
        %p255 = pneg %p254
      $region14: #{transformer_forward.1} parent=5 // pred_check_branch
        %257 = sbr.rel (%p255) target = $region16
      $region15: #{transformer_forward.1} parent=5 // pred_region
        // Predicated region
        $region17: #{transformer_forward.1} parent=15 // pred_check
          %p258 = pneg %p51
        $region18: #{transformer_forward.1} parent=15 // pred_check_branch
          %260 = sbr.rel (%p258) target = $region20
        $region19: #{transformer_forward.1} parent=15 // pred_region
          %s261 = sand.u32 %s41, 1
          %s262 = scalar_lea.sflag [#allocation4], %s261
          %s263 = sand.u32 %s41, 1
          %s264 = smul.addr %s263, 8
          %s265 = scalar_lea.vmem [#allocation3], %s264
          %s267 = ssub.s32 128, 128
          %268 = vsyncadd %s262, %s267
          %s269 = smul.addr %s26, 128
          %s270 = scalar_lea.hbm %s0, %s269
          %s272 = sshll.u32 %s265, 4
          %s273 = int_to_ptr.vmem [resolvable:$true] %s272
          %275 = dma.hbm_to_vmem [thread:$0]  %s270, 128, %s273, %s262
        $region20: #{transformer_forward.1} parent=15 // pred_fallthru
          _
        // Predicated region
        $region21: #{transformer_forward.1} parent=15 // pred_check
          %p276 = pneg %p77
        $region22: #{transformer_forward.1} parent=15 // pred_check_branch
          %278 = sbr.rel (%p276) target = $region24
        $region23: #{transformer_forward.1} parent=15 // pred_region
          %p279 = scmp.lt.s32.totalorder %s27, 1
          %s280 = scalar_select %p279, %s27, 1
          %s281 = smul.addr %s280, 4
          %s282 = smul.addr %s281, 4
          %s283 = scalar_lea.vmem %s1, %s282
        $region24: #{transformer_forward.1} parent=15 // pred_fallthru
          _
        // Predicated region
        $region25: #{transformer_forward.1} parent=15 // pred_check
          %p284 = pneg %p103
        $region26: #{transformer_forward.1} parent=15 // pred_check_branch
          %286 = sbr.rel (%p284) target = $region28
        $region27: #{transformer_forward.1} parent=15 // pred_region
          %p287 = scmp.lt.s32.totalorder %s27, 1
          %s288 = scalar_select %p287, %s27, 1
          %s289 = smul.addr %s288, 4
          %s290 = smul.addr %s289, 4
          %s291 = scalar_lea.vmem %s2, %s290
        $region28: #{transformer_forward.1} parent=15 // pred_fallthru
          _
        // Predicated region
        $region29: #{transformer_forward.1} parent=15 // pred_check
          %p292 = pneg %p129
        $region30: #{transformer_forward.1} parent=15 // pred_check_branch
          %294 = sbr.rel (%p292) target = $region32
        $region31: #{transformer_forward.1} parent=15 // pred_region
          %p295 = scmp.lt.s32.totalorder %s27, 1
          %s296 = scalar_select %p295, %s27, 1
          %s297 = smul.addr %s296, 4
          %s298 = smul.addr %s297, 4
          %s299 = scalar_lea.vmem %s3, %s298
        $region32: #{transformer_forward.1} parent=15 // pred_fallthru
          _
        // Predicated region
        $region33: #{transformer_forward.1} parent=15 // pred_check
          %p300 = pneg %p155
        $region34: #{transformer_forward.1} parent=15 // pred_check_branch
          %302 = sbr.rel (%p300) target = $region36
        $region35: #{transformer_forward.1} parent=15 // pred_region
          %p303 = scmp.lt.s32.totalorder %s27, 1
          %s304 = scalar_select %p303, %s27, 1
          %s305 = smul.addr %s304, 8
          %s306 = smul.addr %s305, 4
          %s307 = scalar_lea.vmem %s4, %s306
        $region36: #{transformer_forward.1} parent=15 // pred_fallthru
          _
        // Predicated region
        $region37: #{transformer_forward.1} parent=15 // pred_check
          %p308 = pneg %p181
        $region38: #{transformer_forward.1} parent=15 // pred_check_branch
          %310 = sbr.rel (%p308) target = $region40
        $region39: #{transformer_forward.1} parent=15 // pred_region
          %p311 = scmp.lt.s32.totalorder %s27, 1
          %s312 = scalar_select %p311, %s27, 1
          %s313 = smul.addr %s312, 8
          %s314 = scalar_lea.vmem %s5, %s313
        $region40: #{transformer_forward.1} parent=15 // pred_fallthru
          _
        // Predicated region
        $region41: #{transformer_forward.1} parent=15 // pred_check
          %p315 = pneg %p207
        $region42: #{transformer_forward.1} parent=15 // pred_check_branch
          %317 = sbr.rel (%p315) target = $region44
        $region43: #{transformer_forward.1} parent=15 // pred_region
          %p318 = scmp.lt.s32.totalorder %s27, 1
          %s319 = scalar_select %p318, %s27, 1
          %s320 = scalar_lea.vmem %s6, %s319
        $region44: #{transformer_forward.1} parent=15 // pred_fallthru
          _
      $region16: #{transformer_forward.1} parent=5 // pred_fallthru
        _
      %p321 = scmp.le.s32.totalorder 1, %s19
      %p322 = scmp.lt.s32.totalorder %s19, 5
      %p323 = pnand %p321, %p322
      %p324 = pneg %p323
      // Predicated region
      $region45: #{transformer_forward.1} parent=5 // pred_check
        _
      $region46: #{transformer_forward.1} parent=5 // pred_check_branch
        %326 = sbr.rel (%p323) target = $region48
      $region47: #{transformer_forward.1} parent=5 // pred_region
        %s327 = ssub.s32 %s19, 1
        %s328 = sand.u32 %s44, 1
        %s329 = scalar_lea.sflag [#allocation4], %s328
        %s330 = sand.u32 %s44, 1
        %s331 = smul.addr %s330, 8
        %s332 = scalar_lea.vmem [#allocation3], %s331
        // Predicated region
        $region49: #{transformer_forward.1} parent=47 // pred_check
          %p333 = pneg %p57
        $region50: #{transformer_forward.1} parent=47 // pred_check_branch
          %335 = sbr.rel (%p333) target = $region52
        $region51: #{transformer_forward.1} parent=47 // pred_region
          %336 = dma.done %s329, 128
        $region52: #{transformer_forward.1} parent=47 // pred_fallthru
          _
        %s337 = sand.u32 %s44, 1
        %s338 = scalar_lea.sflag [#allocation4], %s337
        %s339 = sand.u32 %s44, 1
        %s340 = smul.addr %s339, 8
        %s341 = scalar_lea.vmem [#allocation3], %s340
        %p342 = pneg %p57
        %p343 = pneg %p54
        %p344 = scmp.lt.s32.totalorder %s29, 1
        %s345 = scalar_select %p344, %s29, 1
        %s346 = smul.addr %s345, 4
        %s347 = smul.addr %s346, 4
        %s348 = scalar_lea.vmem %s1, %s347
        %p349 = pneg %p83
        %p350 = pneg %p80
        %p351 = scmp.lt.s32.totalorder %s29, 1
        %s352 = scalar_select %p351, %s29, 1
        %s353 = smul.addr %s352, 4
        %s354 = smul.addr %s353, 4
        %s355 = scalar_lea.vmem %s2, %s354
        %p356 = pneg %p109
        %p357 = pneg %p106
        %p358 = scmp.lt.s32.totalorder %s29, 1
        %s359 = scalar_select %p358, %s29, 1
        %s360 = smul.addr %s359, 4
        %s361 = smul.addr %s360, 4
        %s362 = scalar_lea.vmem %s3, %s361
        %p363 = pneg %p135
        %p364 = pneg %p132
        %p365 = scmp.lt.s32.totalorder %s29, 1
        %s366 = scalar_select %p365, %s29, 1
        %s367 = smul.addr %s366, 8
        %s368 = smul.addr %s367, 4
        %s369 = scalar_lea.vmem %s4, %s368
        %p370 = pneg %p161
        %p371 = pneg %p158
        %p372 = scmp.lt.s32.totalorder %s29, 1
        %s373 = scalar_select %p372, %s29, 1
        %s374 = smul.addr %s373, 8
        %s375 = scalar_lea.vmem %s5, %s374
        %p376 = pneg %p187
        %p377 = pneg %p184
        %p378 = scmp.lt.s32.totalorder %s29, 1
        %s379 = scalar_select %p378, %s29, 1
        %s380 = scalar_lea.vmem %s6, %s379
        %p381 = pneg %p213
        %p382 = pneg %p210
        %p383 = pneg %p239
        %p384 = pneg %p236
        %s385 = sand.u32 %s226, 1
        %s386 = scalar_lea.sflag [#allocation5], %s385
        %s387 = sand.u32 %s226, 1
        %s388 = smul.addr %s387, 8
        %s389 = scalar_lea.vmem [#allocation6], %s388
        %p390 = scmp.lt.s32.totalorder %s29, 1
        %s391 = scalar_select %p390, %s29, 1
        %s392 = smul.addr %s391, 4
        %s393 = smul.addr %s392, 4
        %s394 = scalar_lea.vmem %s1, %s393
        %p395 = scmp.lt.s32.totalorder %s29, 1
        %s396 = scalar_select %p395, %s29, 1
        %s397 = smul.addr %s396, 4
        %s398 = smul.addr %s397, 4
        %s399 = scalar_lea.vmem %s2, %s398
        %p400 = scmp.lt.s32.totalorder %s29, 1
        %s401 = scalar_select %p400, %s29, 1
        %s402 = smul.addr %s401, 4
        %s403 = smul.addr %s402, 4
        %s404 = scalar_lea.vmem %s3, %s403
        %p405 = scmp.lt.s32.totalorder %s29, 1
        %s406 = scalar_select %p405, %s29, 1
        %s407 = smul.addr %s406, 8
        %s408 = smul.addr %s407, 4
        %s409 = scalar_lea.vmem %s4, %s408
        %p410 = scmp.lt.s32.totalorder %s29, 1
        %s411 = scalar_select %p410, %s29, 1
        %s412 = smul.addr %s411, 8
        %s413 = scalar_lea.vmem %s5, %s412
        %p414 = scmp.lt.s32.totalorder %s29, 1
        %s415 = scalar_select %p414, %s29, 1
        %s416 = scalar_lea.vmem %s6, %s415
        %p418 = scmp.eq.s32.totalorder %s29, 0
        // Predicated region
        $region53: #{transformer_forward.1} parent=47 // pred_check
          %p419 = pneg %p418
        $region54: #{transformer_forward.1} parent=47 // pred_check_branch
          %421 = sbr.rel (%p419) target = $region56
        $region55: #{transformer_forward.1} parent=47 // pred_region
          %v422 = vld [vmem:[%s332] sm:$0xff]
          %vm423 = vcmask 261120
          %424 = vst.msk [vmem:[#allocation2] sm:$0xff] %vm423, %v422
        $region56: #{transformer_forward.1} parent=47 // pred_fallthru
          _
        %v425 = vld [vmem:[#allocation2] sm:$0xff]
        %v426 = vld [vmem:[%s413] sm:$0x3f]
        %v427 = vld [vmem:[%s416] sm:$0x1]
        %vm428 = vcmask 261120
        %v429 = vsel %vm428, %v425, 0.0
        %430 = vadd.xlane.f32.xlu0 %v429
        %v431 = vpop.xlane.xlu0 %430
        %v432 = vrcp.pop 32.0
        %v433 = vmul.f32 %v431, %v432
        %v434 = vsub.f32 %v425, %v433
        %v435 = vmul.f32 %v434, %v434
        %v436 = vsel %vm428, %v435, 0.0
        %437 = vadd.xlane.f32.xlu0 %v436
        %v438 = vpop.xlane.xlu0 %437
        %v439 = vmul.f32 %v438, %v432
        %v440 = vadd.f32 %v439, 1e-05
        %v441 = vrsqrt.pop %v440
        %v442 = vmul.f32 %v434, %v441
        %v443 = vlaneseq
        %v444 = vshrl.u32 %v443, 7
        %v445 = vsub.s32 0, %v444
        %v446 = vrot.slane %v426, %v445
        %v447 = vmul.f32 %v442, %v446
        %v448 = vlaneseq
        %v449 = vshrl.u32 %v448, 7
        %v450 = vsub.s32 1, %v449
        %v451 = vrot.slane %v426, %v450
        %v452 = vadd.f32 %v447, %v451
        %v453 = vpack.c.bf16 %v452, %v452
        %v454 = vld [vmem:[%s394] sm:$0xf]
        %v455 = vld [vmem:[%s394 + $0x4] sm:$0xf]
        %v456 = vld [vmem:[%s394 + $0x8] sm:$0xf]
        %v457 = vld [vmem:[%s394 + $0xc] sm:$0xf]
        %v462 = vunpack.c.l.b16 %v454
        %v463 = vunpack.c.l.b16 %v455
        %v464 = vunpack.c.l.b16 %v456
        %v465 = vunpack.c.l.b16 %v457
        %v466 = vpack.c.b16 %v463, %v462
        %v467 = vpack.c.b16 %v465, %v464
        %v471 = vsel %vm428, %v453, 0
        %473 = vmatprep.subr.bf16.mxu0 0
        %474 = vmatpush1.bf16.msra.mxu0 0
        %475 = vmatprep.subr.bf16.mxu0 0
        %476 = vmatpush1.bf16.msra.mxu0 0
        %477 = vmatprep.subr.bf16.mxu0 0
        %478 = vmatpush1.bf16.msra.mxu0 0
        %479 = vmatprep.subr.bf16.mxu0 0
        %480 = vmatpush1.bf16.msra.mxu0 0
        %481 = vmatprep.subr.bf16.mxu0 0
        %482 = vmatpush1.bf16.msra.mxu0 0
        %483 = vmatprep.subr.bf16.mxu0 0
        %484 = vmatpush1.bf16.msra.mxu0 0
        %485 = vmatprep.subr.bf16.mxu0 0
        %486 = vmatpush1.bf16.msra.mxu0 %v467
        %487 = vmatprep.subr.bf16.mxu0 0
        %488 = vmatpush1.bf16.msra.mxu0 %v466
        %489 = vmatprep.subr.bf16.mxu0 0
        %490 = vmatpush2.bf16.msra.mxu0 0
        %491 = vmatprep.subr.bf16.mxu0 0
        %492 = vmatpush2.bf16.msra.mxu0 0
        %493 = vmatprep.subr.bf16.mxu0 0
        %494 = vmatpush2.bf16.msra.mxu0 0
        %495 = vmatprep.subr.bf16.mxu0 0
        %496 = vmatpush2.bf16.msra.mxu0 0
        %497 = vmatprep.subr.bf16.mxu0 0
        %498 = vmatpush2.bf16.msra.mxu0 0
        %499 = vmatprep.subr.bf16.mxu0 0
        %500 = vmatpush2.bf16.msra.mxu0 0
        %501 = vmatprep.subr.bf16.mxu0 0
        %502 = vmatpush2.bf16.msra.mxu0 0
        %503 = vmatprep.subr.bf16.mxu0 0
        %504 = vmatpush2.bf16.msra.mxu0 0
        %505 = vmatprep.mubr.bf16.mxu0 0
        %506 = vmatmul.mubr.bf16.gmra.mxu0 %v471
        %v507 = vpop.f32.mrf.mxu0
        %v508 = vadd.f32 0.0, %v507
        %v509 = vpop.f32.mrf.mxu0
        %v510 = vpop.f32.mrf.mxu0
        %v511 = vpop.f32.mrf.mxu0
        %512 = vdwg.mxu0
        %v513 = vpack.c.bf16 %v508, %v508
        %515 = vrot.lane.b32.xlu0 %v513, 96
        %v516 = vpop.permute.xlu0 %515
        %vm517 = vcmask 64512
        %v519 = vsel %vm517, %v513, 0
        %v522 = vsel %vm517, %v516, 0
        %524 = vmatprep.subr.bf16.mxu0 0
        %525 = vmatpush1.bf16.xpose.msra.mxu0 0
        %526 = vmatprep.subr.bf16.mxu0 0
        %527 = vmatpush1.bf16.xpose.msra.mxu0 0
        %528 = vmatprep.subr.bf16.mxu0 0
        %529 = vmatpush1.bf16.xpose.msra.mxu0 0
        %530 = vmatprep.subr.bf16.mxu0 0
        %531 = vmatpush1.bf16.xpose.msra.mxu0 0
        %532 = vmatprep.subr.bf16.mxu0 0
        %533 = vmatpush1.bf16.xpose.msra.mxu0 0
        %534 = vmatprep.subr.bf16.mxu0 0
        %535 = vmatpush1.bf16.xpose.msra.mxu0 0
        %536 = vmatprep.subr.bf16.mxu0 0
        %537 = vmatpush1.bf16.xpose.msra.mxu0 0
        %538 = vmatprep.subr.bf16.mxu0 0
        %539 = vmatpush1.bf16.xpose.msra.mxu0 %v522
        %540 = vmatprep.subr.bf16.mxu0 0
        %541 = vmatpush2.bf16.xpose.msra.mxu0 0
        %542 = vmatprep.subr.bf16.mxu0 0
        %543 = vmatpush2.bf16.xpose.msra.mxu0 0
        %544 = vmatprep.subr.bf16.mxu0 0
        %545 = vmatpush2.bf16.xpose.msra.mxu0 0
        %546 = vmatprep.subr.bf16.mxu0 0
        %547 = vmatpush2.bf16.xpose.msra.mxu0 0
        %548 = vmatprep.subr.bf16.mxu0 0
        %549 = vmatpush2.bf16.xpose.msra.mxu0 0
        %550 = vmatprep.subr.bf16.mxu0 0
        %551 = vmatpush2.bf16.xpose.msra.mxu0 0
        %552 = vmatprep.subr.bf16.mxu0 0
        %553 = vmatpush2.bf16.xpose.msra.mxu0 0
        %554 = vmatprep.subr.bf16.mxu0 0
        %555 = vmatpush2.bf16.xpose.msra.mxu0 0
        %556 = vmatprep.mubr.bf16.mxu0 0
        %557 = vmatmul.mubr.bf16.gmra.mxu0 %v519
        %v558 = vpop.f32.mrf.mxu0
        %v559 = vadd.f32 0.0, %v558
        %v560 = vpop.f32.mrf.mxu0
        %v561 = vpop.f32.mrf.mxu0
        %v562 = vpop.f32.mrf.mxu0
        %563 = vdwg.mxu0
        %v564 = vsel %vm517, %v559, -inf
        %565 = vmax.xlane.f32.xlu0 %v564
        %v566 = vpop.xlane.xlu0 %565
        %v567 = vsub.f32 %v559, %v566
        %v568 = vmul.f32 %v567, 1.442695
        %v569 = vpow.pop %v568
        %v570 = vsel %vm517, %v569, 0.0
        %571 = vadd.xlane.f32.xlu0 %v570
        %v572 = vpop.xlane.xlu0 %571
        %v573 = vrcp.pop %v572
        %v574 = vmul.f32 %v569, %v573
        %v575 = vpack.c.bf16 %v574, %v574
        %576 = vrot.lane.b32.xlu0 %v513, 64
        %v577 = vpop.permute.xlu0 %576
        %v579 = vsel %vm517, %v575, 0
        %vm581 = vcmask 1043456
        %v583 = vsel %vm581, %v577, 0
        %585 = vmatprep.subr.bf16.mxu0 0
        %586 = vmatpush1.bf16.msra.mxu0 0
        %587 = vmatprep.subr.bf16.mxu0 0
        %588 = vmatpush1.bf16.msra.mxu0 0
        %589 = vmatprep.subr.bf16.mxu0 0
        %590 = vmatpush1.bf16.msra.mxu0 0
        %591 = vmatprep.subr.bf16.mxu0 0
        %592 = vmatpush1.bf16.msra.mxu0 0
        %593 = vmatprep.subr.bf16.mxu0 0
        %594 = vmatpush1.bf16.msra.mxu0 0
        %595 = vmatprep.subr.bf16.mxu0 0
        %596 = vmatpush1.bf16.msra.mxu0 0
        %597 = vmatprep.subr.bf16.mxu0 0
        %598 = vmatpush1.bf16.msra.mxu0 0
        %599 = vmatprep.subr.bf16.mxu0 0
        %600 = vmatpush1.bf16.msra.mxu0 %v583
        %601 = vmatprep.subr.bf16.mxu0 0
        %602 = vmatpush2.bf16.msra.mxu0 0
        %603 = vmatprep.subr.bf16.mxu0 0
        %604 = vmatpush2.bf16.msra.mxu0 0
        %605 = vmatprep.subr.bf16.mxu0 0
        %606 = vmatpush2.bf16.msra.mxu0 0
        %607 = vmatprep.subr.bf16.mxu0 0
        %608 = vmatpush2.bf16.msra.mxu0 0
        %609 = vmatprep.subr.bf16.mxu0 0
        %610 = vmatpush2.bf16.msra.mxu0 0
        %611 = vmatprep.subr.bf16.mxu0 0
        %612 = vmatpush2.bf16.msra.mxu0 0
        %613 = vmatprep.subr.bf16.mxu0 0
        %614 = vmatpush2.bf16.msra.mxu0 0
        %615 = vmatprep.subr.bf16.mxu0 0
        %616 = vmatpush2.bf16.msra.mxu0 0
        %617 = vmatprep.mubr.bf16.mxu0 0
        %618 = vmatmul.mubr.bf16.gmra.mxu0 %v579
        %v619 = vpop.f32.mrf.mxu0
        %v620 = vadd.f32 0.0, %v619
        %v621 = vpop.f32.mrf.mxu0
        %v622 = vpop.f32.mrf.mxu0
        %v623 = vpop.f32.mrf.mxu0
        %624 = vdwg.mxu0
        %625 = vrot.lane.b32.xlu0 %v513, 120
        %v626 = vpop.permute.xlu0 %625
        %627 = vrot.lane.b32.xlu0 %v513, 88
        %v628 = vpop.permute.xlu0 %627
        %v630 = vsel %vm517, %v626, 0
        %v633 = vsel %vm517, %v628, 0
        %635 = vmatprep.subr.bf16.mxu0 0
        %636 = vmatpush1.bf16.xpose.msra.mxu0 0
        %637 = vmatprep.subr.bf16.mxu0 0
        %638 = vmatpush1.bf16.xpose.msra.mxu0 0
        %639 = vmatprep.subr.bf16.mxu0 0
        %640 = vmatpush1.bf16.xpose.msra.mxu0 0
        %641 = vmatprep.subr.bf16.mxu0 0
        %642 = vmatpush1.bf16.xpose.msra.mxu0 0
        %643 = vmatprep.subr.bf16.mxu0 0
        %644 = vmatpush1.bf16.xpose.msra.mxu0 0
        %645 = vmatprep.subr.bf16.mxu0 0
        %646 = vmatpush1.bf16.xpose.msra.mxu0 0
        %647 = vmatprep.subr.bf16.mxu0 0
        %648 = vmatpush1.bf16.xpose.msra.mxu0 0
        %649 = vmatprep.subr.bf16.mxu0 0
        %650 = vmatpush1.bf16.xpose.msra.mxu0 %v633
        %651 = vmatprep.subr.bf16.mxu0 0
        %652 = vmatpush2.bf16.xpose.msra.mxu0 0
        %653 = vmatprep.subr.bf16.mxu0 0
        %654 = vmatpush2.bf16.xpose.msra.mxu0 0
        %655 = vmatprep.subr.bf16.mxu0 0
        %656 = vmatpush2.bf16.xpose.msra.mxu0 0
        %657 = vmatprep.subr.bf16.mxu0 0
        %658 = vmatpush2.bf16.xpose.msra.mxu0 0
        %659 = vmatprep.subr.bf16.mxu0 0
        %660 = vmatpush2.bf16.xpose.msra.mxu0 0
        %661 = vmatprep.subr.bf16.mxu0 0
        %662 = vmatpush2.bf16.xpose.msra.mxu0 0
        %663 = vmatprep.subr.bf16.mxu0 0
        %664 = vmatpush2.bf16.xpose.msra.mxu0 0
        %665 = vmatprep.subr.bf16.mxu0 0
        %666 = vmatpush2.bf16.xpose.msra.mxu0 0
        %667 = vmatprep.mubr.bf16.mxu0 0
        %668 = vmatmul.mubr.bf16.gmra.mxu0 %v630
        %v669 = vpop.f32.mrf.mxu0
        %v670 = vadd.f32 0.0, %v669
        %v671 = vpop.f32.mrf.mxu0
        %v672 = vpop.f32.mrf.mxu0
        %v673 = vpop.f32.mrf.mxu0
        %674 = vdwg.mxu0
        %v675 = vsel %vm517, %v670, -inf
        %676 = vmax.xlane.f32.xlu0 %v675
        %v677 = vpop.xlane.xlu0 %676
        %v678 = vsub.f32 %v670, %v677
        %v679 = vmul.f32 %v678, 1.442695
        %v680 = vpow.pop %v679
        %v681 = vsel %vm517, %v680, 0.0
        %682 = vadd.xlane.f32.xlu0 %v681
        %v683 = vpop.xlane.xlu0 %682
        %v684 = vrcp.pop %v683
        %v685 = vmul.f32 %v680, %v684
        %v686 = vpack.c.bf16 %v685, %v685
        %687 = vrot.lane.b32.xlu0 %v513, 56
        %v688 = vpop.permute.xlu0 %687
        %v690 = vsel %vm517, %v686, 0
        %v693 = vsel %vm581, %v688, 0
        %695 = vmatprep.subr.bf16.mxu0 0
        %696 = vmatpush1.bf16.msra.mxu0 0
        %697 = vmatprep.subr.bf16.mxu0 0
        %698 = vmatpush1.bf16.msra.mxu0 0
        %699 = vmatprep.subr.bf16.mxu0 0
        %700 = vmatpush1.bf16.msra.mxu0 0
        %701 = vmatprep.subr.bf16.mxu0 0
        %702 = vmatpush1.bf16.msra.mxu0 0
        %703 = vmatprep.subr.bf16.mxu0 0
        %704 = vmatpush1.bf16.msra.mxu0 0
        %705 = vmatprep.subr.bf16.mxu0 0
        %706 = vmatpush1.bf16.msra.mxu0 0
        %707 = vmatprep.subr.bf16.mxu0 0
        %708 = vmatpush1.bf16.msra.mxu0 0
        %709 = vmatprep.subr.bf16.mxu0 0
        %710 = vmatpush1.bf16.msra.mxu0 %v693
        %711 = vmatprep.subr.bf16.mxu0 0
        %712 = vmatpush2.bf16.msra.mxu0 0
        %713 = vmatprep.subr.bf16.mxu0 0
        %714 = vmatpush2.bf16.msra.mxu0 0
        %715 = vmatprep.subr.bf16.mxu0 0
        %716 = vmatpush2.bf16.msra.mxu0 0
        %717 = vmatprep.subr.bf16.mxu0 0
        %718 = vmatpush2.bf16.msra.mxu0 0
        %719 = vmatprep.subr.bf16.mxu0 0
        %720 = vmatpush2.bf16.msra.mxu0 0
        %721 = vmatprep.subr.bf16.mxu0 0
        %722 = vmatpush2.bf16.msra.mxu0 0
        %723 = vmatprep.subr.bf16.mxu0 0
        %724 = vmatpush2.bf16.msra.mxu0 0
        %725 = vmatprep.subr.bf16.mxu0 0
        %726 = vmatpush2.bf16.msra.mxu0 0
        %727 = vmatprep.mubr.bf16.mxu0 0
        %728 = vmatmul.mubr.bf16.gmra.mxu0 %v690
        %v729 = vpop.f32.mrf.mxu0
        %v730 = vadd.f32 0.0, %v729
        %v731 = vpop.f32.mrf.mxu0
        %v732 = vpop.f32.mrf.mxu0
        %v733 = vpop.f32.mrf.mxu0
        %734 = vdwg.mxu0
        %735 = vrot.lane.b32.xlu0 %v513, 112
        %v736 = vpop.permute.xlu0 %735
        %737 = vrot.lane.b32.xlu0 %v513, 80
        %v738 = vpop.permute.xlu0 %737
        %v740 = vsel %vm517, %v736, 0
        %v743 = vsel %vm517, %v738, 0
        %745 = vmatprep.subr.bf16.mxu0 0
        %746 = vmatpush1.bf16.xpose.msra.mxu0 0
        %747 = vmatprep.subr.bf16.mxu0 0
        %748 = vmatpush1.bf16.xpose.msra.mxu0 0
        %749 = vmatprep.subr.bf16.mxu0 0
        %750 = vmatpush1.bf16.xpose.msra.mxu0 0
        %751 = vmatprep.subr.bf16.mxu0 0
        %752 = vmatpush1.bf16.xpose.msra.mxu0 0
        %753 = vmatprep.subr.bf16.mxu0 0
        %754 = vmatpush1.bf16.xpose.msra.mxu0 0
        %755 = vmatprep.subr.bf16.mxu0 0
        %756 = vmatpush1.bf16.xpose.msra.mxu0 0
        %757 = vmatprep.subr.bf16.mxu0 0
        %758 = vmatpush1.bf16.xpose.msra.mxu0 0
        %759 = vmatprep.subr.bf16.mxu0 0
        %760 = vmatpush1.bf16.xpose.msra.mxu0 %v743
        %761 = vmatprep.subr.bf16.mxu0 0
        %762 = vmatpush2.bf16.xpose.msra.mxu0 0
        %763 = vmatprep.subr.bf16.mxu0 0
        %764 = vmatpush2.bf16.xpose.msra.mxu0 0
        %765 = vmatprep.subr.bf16.mxu0 0
        %766 = vmatpush2.bf16.xpose.msra.mxu0 0
        %767 = vmatprep.subr.bf16.mxu0 0
        %768 = vmatpush2.bf16.xpose.msra.mxu0 0
        %769 = vmatprep.subr.bf16.mxu0 0
        %770 = vmatpush2.bf16.xpose.msra.mxu0 0
        %771 = vmatprep.subr.bf16.mxu0 0
        %772 = vmatpush2.bf16.xpose.msra.mxu0 0
        %773 = vmatprep.subr.bf16.mxu0 0
        %774 = vmatpush2.bf16.xpose.msra.mxu0 0
        %775 = vmatprep.subr.bf16.mxu0 0
        %776 = vmatpush2.bf16.xpose.msra.mxu0 0
        %777 = vmatprep.mubr.bf16.mxu0 0
        %778 = vmatmul.mubr.bf16.gmra.mxu0 %v740
        %v779 = vpop.f32.mrf.mxu0
        %v780 = vadd.f32 0.0, %v779
        %v781 = vpop.f32.mrf.mxu0
        %v782 = vpop.f32.mrf.mxu0
        %v783 = vpop.f32.mrf.mxu0
        %784 = vdwg.mxu0
        %v785 = vsel %vm517, %v780, -inf
        %786 = vmax.xlane.f32.xlu0 %v785
        %v787 = vpop.xlane.xlu0 %786
        %v788 = vsub.f32 %v780, %v787
        %v789 = vmul.f32 %v788, 1.442695
        %v790 = vpow.pop %v789
        %v791 = vsel %vm517, %v790, 0.0
        %792 = vadd.xlane.f32.xlu0 %v791
        %v793 = vpop.xlane.xlu0 %792
        %v794 = vrcp.pop %v793
        %v795 = vmul.f32 %v790, %v794
        %v796 = vpack.c.bf16 %v795, %v795
        %797 = vrot.lane.b32.xlu0 %v513, 48
        %v798 = vpop.permute.xlu0 %797
        %v800 = vsel %vm517, %v796, 0
        %v803 = vsel %vm581, %v798, 0
        %805 = vmatprep.subr.bf16.mxu0 0
        %806 = vmatpush1.bf16.msra.mxu0 0
        %807 = vmatprep.subr.bf16.mxu0 0
        %808 = vmatpush1.bf16.msra.mxu0 0
        %809 = vmatprep.subr.bf16.mxu0 0
        %810 = vmatpush1.bf16.msra.mxu0 0
        %811 = vmatprep.subr.bf16.mxu0 0
        %812 = vmatpush1.bf16.msra.mxu0 0
        %813 = vmatprep.subr.bf16.mxu0 0
        %814 = vmatpush1.bf16.msra.mxu0 0
        %815 = vmatprep.subr.bf16.mxu0 0
        %816 = vmatpush1.bf16.msra.mxu0 0
        %817 = vmatprep.subr.bf16.mxu0 0
        %818 = vmatpush1.bf16.msra.mxu0 0
        %819 = vmatprep.subr.bf16.mxu0 0
        %820 = vmatpush1.bf16.msra.mxu0 %v803
        %821 = vmatprep.subr.bf16.mxu0 0
        %822 = vmatpush2.bf16.msra.mxu0 0
        %823 = vmatprep.subr.bf16.mxu0 0
        %824 = vmatpush2.bf16.msra.mxu0 0
        %825 = vmatprep.subr.bf16.mxu0 0
        %826 = vmatpush2.bf16.msra.mxu0 0
        %827 = vmatprep.subr.bf16.mxu0 0
        %828 = vmatpush2.bf16.msra.mxu0 0
        %829 = vmatprep.subr.bf16.mxu0 0
        %830 = vmatpush2.bf16.msra.mxu0 0
        %831 = vmatprep.subr.bf16.mxu0 0
        %832 = vmatpush2.bf16.msra.mxu0 0
        %833 = vmatprep.subr.bf16.mxu0 0
        %834 = vmatpush2.bf16.msra.mxu0 0
        %835 = vmatprep.subr.bf16.mxu0 0
        %836 = vmatpush2.bf16.msra.mxu0 0
        %837 = vmatprep.mubr.bf16.mxu0 0
        %838 = vmatmul.mubr.bf16.gmra.mxu0 %v800
        %v839 = vpop.f32.mrf.mxu0
        %v840 = vadd.f32 0.0, %v839
        %v841 = vpop.f32.mrf.mxu0
        %v842 = vpop.f32.mrf.mxu0
        %v843 = vpop.f32.mrf.mxu0
        %844 = vdwg.mxu0
        %845 = vrot.lane.b32.xlu0 %v513, 104
        %v846 = vpop.permute.xlu0 %845
        %847 = vrot.lane.b32.xlu0 %v513, 72
        %v848 = vpop.permute.xlu0 %847
        %v850 = vsel %vm517, %v846, 0
        %v853 = vsel %vm517, %v848, 0
        %855 = vmatprep.subr.bf16.mxu0 0
        %856 = vmatpush1.bf16.xpose.msra.mxu0 0
        %857 = vmatprep.subr.bf16.mxu0 0
        %858 = vmatpush1.bf16.xpose.msra.mxu0 0
        %859 = vmatprep.subr.bf16.mxu0 0
        %860 = vmatpush1.bf16.xpose.msra.mxu0 0
        %861 = vmatprep.subr.bf16.mxu0 0
        %862 = vmatpush1.bf16.xpose.msra.mxu0 0
        %863 = vmatprep.subr.bf16.mxu0 0
        %864 = vmatpush1.bf16.xpose.msra.mxu0 0
        %865 = vmatprep.subr.bf16.mxu0 0
        %866 = vmatpush1.bf16.xpose.msra.mxu0 0
        %867 = vmatprep.subr.bf16.mxu0 0
        %868 = vmatpush1.bf16.xpose.msra.mxu0 0
        %869 = vmatprep.subr.bf16.mxu0 0
        %870 = vmatpush1.bf16.xpose.msra.mxu0 %v853
        %871 = vmatprep.subr.bf16.mxu0 0
        %872 = vmatpush2.bf16.xpose.msra.mxu0 0
        %873 = vmatprep.subr.bf16.mxu0 0
        %874 = vmatpush2.bf16.xpose.msra.mxu0 0
        %875 = vmatprep.subr.bf16.mxu0 0
        %876 = vmatpush2.bf16.xpose.msra.mxu0 0
        %877 = vmatprep.subr.bf16.mxu0 0
        %878 = vmatpush2.bf16.xpose.msra.mxu0 0
        %879 = vmatprep.subr.bf16.mxu0 0
        %880 = vmatpush2.bf16.xpose.msra.mxu0 0
        %881 = vmatprep.subr.bf16.mxu0 0
        %882 = vmatpush2.bf16.xpose.msra.mxu0 0
        %883 = vmatprep.subr.bf16.mxu0 0
        %884 = vmatpush2.bf16.xpose.msra.mxu0 0
        %885 = vmatprep.subr.bf16.mxu0 0
        %886 = vmatpush2.bf16.xpose.msra.mxu0 0
        %887 = vmatprep.mubr.bf16.mxu0 0
        %888 = vmatmul.mubr.bf16.gmra.mxu0 %v850
        %v889 = vpop.f32.mrf.mxu0
        %v890 = vadd.f32 0.0, %v889
        %v891 = vpop.f32.mrf.mxu0
        %v892 = vpop.f32.mrf.mxu0
        %v893 = vpop.f32.mrf.mxu0
        %894 = vdwg.mxu0
        %v895 = vsel %vm517, %v890, -inf
        %896 = vmax.xlane.f32.xlu0 %v895
        %v897 = vpop.xlane.xlu0 %896
        %v898 = vsub.f32 %v890, %v897
        %v899 = vmul.f32 %v898, 1.442695
        %v900 = vpow.pop %v899
        %v901 = vsel %vm517, %v900, 0.0
        %902 = vadd.xlane.f32.xlu0 %v901
        %v903 = vpop.xlane.xlu0 %902
        %v904 = vrcp.pop %v903
        %v905 = vmul.f32 %v900, %v904
        %v906 = vpack.c.bf16 %v905, %v905
        %907 = vrot.lane.b32.xlu0 %v513, 40
        %v908 = vpop.permute.xlu0 %907
        %v910 = vsel %vm517, %v906, 0
        %v913 = vsel %vm581, %v908, 0
        %915 = vmatprep.subr.bf16.mxu0 0
        %916 = vmatpush1.bf16.msra.mxu0 0
        %917 = vmatprep.subr.bf16.mxu0 0
        %918 = vmatpush1.bf16.msra.mxu0 0
        %919 = vmatprep.subr.bf16.mxu0 0
        %920 = vmatpush1.bf16.msra.mxu0 0
        %921 = vmatprep.subr.bf16.mxu0 0
        %922 = vmatpush1.bf16.msra.mxu0 0
        %923 = vmatprep.subr.bf16.mxu0 0
        %924 = vmatpush1.bf16.msra.mxu0 0
        %925 = vmatprep.subr.bf16.mxu0 0
        %926 = vmatpush1.bf16.msra.mxu0 0
        %927 = vmatprep.subr.bf16.mxu0 0
        %928 = vmatpush1.bf16.msra.mxu0 0
        %929 = vmatprep.subr.bf16.mxu0 0
        %930 = vmatpush1.bf16.msra.mxu0 %v913
        %931 = vmatprep.subr.bf16.mxu0 0
        %932 = vmatpush2.bf16.msra.mxu0 0
        %933 = vmatprep.subr.bf16.mxu0 0
        %934 = vmatpush2.bf16.msra.mxu0 0
        %935 = vmatprep.subr.bf16.mxu0 0
        %936 = vmatpush2.bf16.msra.mxu0 0
        %937 = vmatprep.subr.bf16.mxu0 0
        %938 = vmatpush2.bf16.msra.mxu0 0
        %939 = vmatprep.subr.bf16.mxu0 0
        %940 = vmatpush2.bf16.msra.mxu0 0
        %941 = vmatprep.subr.bf16.mxu0 0
        %942 = vmatpush2.bf16.msra.mxu0 0
        %943 = vmatprep.subr.bf16.mxu0 0
        %944 = vmatpush2.bf16.msra.mxu0 0
        %945 = vmatprep.subr.bf16.mxu0 0
        %946 = vmatpush2.bf16.msra.mxu0 0
        %947 = vmatprep.mubr.bf16.mxu0 0
        %948 = vmatmul.mubr.bf16.gmra.mxu0 %v910
        %v949 = vpop.f32.mrf.mxu0
        %v950 = vadd.f32 0.0, %v949
        %v951 = vpop.f32.mrf.mxu0
        %v952 = vpop.f32.mrf.mxu0
        %v953 = vpop.f32.mrf.mxu0
        %954 = vdwg.mxu0
        %956 = vrot.lane.b32.xlu0 %v730, 8
        %v957 = vpop.permute.xlu0 %956
        %960 = vrot.lane.b32.xlu0 %v840, 16
        %v961 = vpop.permute.xlu0 %960
        %964 = vrot.lane.b32.xlu0 %v950, 24
        %v965 = vpop.permute.xlu0 %964
        %v967 = vsel %vm517, %v620, %v957
        %vm968 = vcmask 130048
        %v969 = vsel %vm968, %v967, %v961
        %vm970 = vcmask 195584
        %v971 = vsel %vm970, %v969, %v965
        %v972 = vpack.c.bf16 %v971, %v971
        %v973 = vld [vmem:[%s399] sm:$0xf]
        %v974 = vld [vmem:[%s399 + $0x4] sm:$0xf]
        %v975 = vld [vmem:[%s399 + $0x8] sm:$0xf]
        %v976 = vld [vmem:[%s399 + $0xc] sm:$0xf]
        %v977 = vlaneseq
        %v978 = vshrl.u32 %v977, 7
        %v979 = vsub.s32 2, %v978
        %v980 = vrot.slane %v426, %v979
        %v985 = vunpack.c.l.b16 %v973
        %v986 = vunpack.c.l.b16 %v974
        %v987 = vunpack.c.l.b16 %v975
        %v988 = vunpack.c.l.b16 %v976
        %v989 = vpack.c.b16 %v986, %v985
        %v990 = vpack.c.b16 %v988, %v987
        %v994 = vsel %vm428, %v972, 0
        %996 = vmatprep.subr.bf16.mxu0 0
        %997 = vmatpush1.bf16.msra.mxu0 0
        %998 = vmatprep.subr.bf16.mxu0 0
        %999 = vmatpush1.bf16.msra.mxu0 0
        %1000 = vmatprep.subr.bf16.mxu0 0
        %1001 = vmatpush1.bf16.msra.mxu0 0
        %1002 = vmatprep.subr.bf16.mxu0 0
        %1003 = vmatpush1.bf16.msra.mxu0 0
        %1004 = vmatprep.subr.bf16.mxu0 0
        %1005 = vmatpush1.bf16.msra.mxu0 0
        %1006 = vmatprep.subr.bf16.mxu0 0
        %1007 = vmatpush1.bf16.msra.mxu0 0
        %1008 = vmatprep.subr.bf16.mxu0 0
        %1009 = vmatpush1.bf16.msra.mxu0 %v990
        %1010 = vmatprep.subr.bf16.mxu0 0
        %1011 = vmatpush1.bf16.msra.mxu0 %v989
        %1012 = vmatprep.subr.bf16.mxu0 0
        %1013 = vmatpush2.bf16.msra.mxu0 0
        %1014 = vmatprep.subr.bf16.mxu0 0
        %1015 = vmatpush2.bf16.msra.mxu0 0
        %1016 = vmatprep.subr.bf16.mxu0 0
        %1017 = vmatpush2.bf16.msra.mxu0 0
        %1018 = vmatprep.subr.bf16.mxu0 0
        %1019 = vmatpush2.bf16.msra.mxu0 0
        %1020 = vmatprep.subr.bf16.mxu0 0
        %1021 = vmatpush2.bf16.msra.mxu0 0
        %1022 = vmatprep.subr.bf16.mxu0 0
        %1023 = vmatpush2.bf16.msra.mxu0 0
        %1024 = vmatprep.subr.bf16.mxu0 0
        %1025 = vmatpush2.bf16.msra.mxu0 0
        %1026 = vmatprep.subr.bf16.mxu0 0
        %1027 = vmatpush2.bf16.msra.mxu0 0
        %1028 = vmatprep.mubr.bf16.mxu0 0
        %1029 = vmatmul.mubr.bf16.gmra.mxu0 %v994
        %v1030 = vpop.f32.mrf.mxu0
        %v1031 = vadd.f32 %v980, %v1030
        %v1032 = vpop.f32.mrf.mxu0
        %v1033 = vpop.f32.mrf.mxu0
        %v1034 = vpop.f32.mrf.mxu0
        %1035 = vdwg.mxu0
        %v1036 = vadd.f32 %v1031, %v425
        %v1037 = vsel %vm428, %v1036, 0.0
        %1038 = vadd.xlane.f32.xlu0 %v1037
        %v1039 = vpop.xlane.xlu0 %1038
        %v1040 = vmul.f32 %v1039, %v432
        %v1041 = vsub.f32 %v1036, %v1040
        %v1042 = vmul.f32 %v1041, %v1041
        %v1043 = vsel %vm428, %v1042, 0.0
        %1044 = vadd.xlane.f32.xlu0 %v1043
        %v1045 = vpop.xlane.xlu0 %1044
        %v1046 = vmul.f32 %v1045, %v432
        %v1047 = vadd.f32 %v1046, 1e-05
        %v1048 = vrsqrt.pop %v1047
        %v1049 = vmul.f32 %v1041, %v1048
        %v1050 = vlaneseq
        %v1051 = vshrl.u32 %v1050, 7
        %v1052 = vsub.s32 3, %v1051
        %v1053 = vrot.slane %v426, %v1052
        %v1054 = vmul.f32 %v1049, %v1053
        %v1055 = vlaneseq
        %v1056 = vshrl.u32 %v1055, 7
        %v1057 = vsub.s32 4, %v1056
        %v1058 = vrot.slane %v426, %v1057
        %v1059 = vadd.f32 %v1054, %v1058
        %v1060 = vpack.c.bf16 %v1059, %v1059
        %v1061 = vld [vmem:[%s404] sm:$0xf]
        %v1062 = vld [vmem:[%s404 + $0x4] sm:$0xf]
        %v1063 = vld [vmem:[%s404 + $0x8] sm:$0xf]
        %v1064 = vld [vmem:[%s404 + $0xc] sm:$0xf]
        %v1066 = vlaneseq
        %v1067 = vshrl.u32 %v1066, 7
        %v1068 = vsub.s32 0, %v1067
        %v1069 = vrot.slane %v427, %v1068
        %v1075 = vunpack.c.l.b16 %v1061
        %v1076 = vunpack.c.l.b16 %v1062
        %v1077 = vunpack.c.l.b16 %v1063
        %v1078 = vunpack.c.l.b16 %v1064
        %v1079 = vpack.c.b16 %v1076, %v1075
        %v1080 = vpack.c.b16 %v1078, %v1077
        %v1084 = vsel %vm428, %v1060, 0
        %1086 = vmatprep.subr.bf16.mxu0 0
        %1087 = vmatpush1.bf16.msra.mxu0 0
        %1088 = vmatprep.subr.bf16.mxu0 0
        %1089 = vmatpush1.bf16.msra.mxu0 0
        %1090 = vmatprep.subr.bf16.mxu0 0
        %1091 = vmatpush1.bf16.msra.mxu0 0
        %1092 = vmatprep.subr.bf16.mxu0 0
        %1093 = vmatpush1.bf16.msra.mxu0 0
        %1094 = vmatprep.subr.bf16.mxu0 0
        %1095 = vmatpush1.bf16.msra.mxu0 0
        %1096 = vmatprep.subr.bf16.mxu0 0
        %1097 = vmatpush1.bf16.msra.mxu0 0
        %1098 = vmatprep.subr.bf16.mxu0 0
        %1099 = vmatpush1.bf16.msra.mxu0 %v1080
        %1100 = vmatprep.subr.bf16.mxu0 0
        %1101 = vmatpush1.bf16.msra.mxu0 %v1079
        %1102 = vmatprep.subr.bf16.mxu0 0
        %1103 = vmatpush2.bf16.msra.mxu0 0
        %1104 = vmatprep.subr.bf16.mxu0 0
        %1105 = vmatpush2.bf16.msra.mxu0 0
        %1106 = vmatprep.subr.bf16.mxu0 0
        %1107 = vmatpush2.bf16.msra.mxu0 0
        %1108 = vmatprep.subr.bf16.mxu0 0
        %1109 = vmatpush2.bf16.msra.mxu0 0
        %1110 = vmatprep.subr.bf16.mxu0 0
        %1111 = vmatpush2.bf16.msra.mxu0 0
        %1112 = vmatprep.subr.bf16.mxu0 0
        %1113 = vmatpush2.bf16.msra.mxu0 0
        %1114 = vmatprep.subr.bf16.mxu0 0
        %1115 = vmatpush2.bf16.msra.mxu0 0
        %1116 = vmatprep.subr.bf16.mxu0 0
        %1117 = vmatpush2.bf16.msra.mxu0 0
        %1118 = vmatprep.mubr.bf16.mxu0 0
        %1119 = vmatmul.mubr.bf16.gmra.mxu0 %v1084
        %v1120 = vpop.f32.mrf.mxu0
        %v1121 = vadd.f32 %v1069, %v1120
        %v1122 = vpop.f32.mrf.mxu0
        %v1123 = vpop.f32.mrf.mxu0
        %v1124 = vpop.f32.mrf.mxu0
        %1125 = vdwg.mxu0
        %v1126 = vmul.f32 %v1121, 0.5
        %v1127 = vmul.f32 %v1121, 0.044715
        %v1128 = vmul.f32 %v1127, %v1121
        %v1129 = vmul.f32 %v1128, %v1121
        %v1130 = vadd.f32 %v1121, %v1129
        %v1131 = vmul.f32 %v1130, 0.7978846
        %v1132 = vtanh.pop %v1131
        %v1133 = vadd.f32 %v1132, 1.0
        %v1134 = vmul.f32 %v1126, %v1133
        %v1135 = vpack.c.bf16 %v1134, %v1134
        %v1136 = vld [vmem:[%s409] sm:$0xf]
        %v1137 = vld [vmem:[%s409 + $0x4] sm:$0xf]
        %v1138 = vld [vmem:[%s409 + $0x8] sm:$0xf]
        %v1139 = vld [vmem:[%s409 + $0xc] sm:$0xf]
        %v1140 = vld [vmem:[%s409 + $0x10] sm:$0xf]
        %v1141 = vld [vmem:[%s409 + $0x14] sm:$0xf]
        %v1142 = vld [vmem:[%s409 + $0x18] sm:$0xf]
        %v1143 = vld [vmem:[%s409 + $0x1c] sm:$0xf]
        %v1144 = vlaneseq
        %v1145 = vshrl.u32 %v1144, 7
        %v1146 = vsub.s32 5, %v1145
        %v1147 = vrot.slane %v426, %v1146
        %v1156 = vunpack.c.l.b16 %v1136
        %v1157 = vunpack.c.l.b16 %v1137
        %v1158 = vunpack.c.l.b16 %v1138
        %v1159 = vunpack.c.l.b16 %v1139
        %v1160 = vunpack.c.l.b16 %v1140
        %v1161 = vunpack.c.l.b16 %v1141
        %v1162 = vunpack.c.l.b16 %v1142
        %v1163 = vunpack.c.l.b16 %v1143
        %v1164 = vpack.c.b16 %v1157, %v1156
        %v1165 = vpack.c.b16 %v1159, %v1158
        %v1166 = vpack.c.b16 %v1161, %v1160
        %v1167 = vpack.c.b16 %v1163, %v1162
        %vm1172 = vcmask 523264
        %v1174 = vsel %vm1172, %v1135, 0
        %1176 = vmatprep.subr.bf16.mxu0 0
        %1177 = vmatpush1.bf16.msra.mxu0 0
        %1178 = vmatprep.subr.bf16.mxu0 0
        %1179 = vmatpush1.bf16.msra.mxu0 0
        %1180 = vmatprep.subr.bf16.mxu0 0
        %1181 = vmatpush1.bf16.msra.mxu0 0
        %1182 = vmatprep.subr.bf16.mxu0 0
        %1183 = vmatpush1.bf16.msra.mxu0 0
        %1184 = vmatprep.subr.bf16.mxu0 0
        %1185 = vmatpush1.bf16.msra.mxu0 %v1167
        %1186 = vmatprep.subr.bf16.mxu0 0
        %1187 = vmatpush1.bf16.msra.mxu0 %v1166
        %1188 = vmatprep.subr.bf16.mxu0 0
        %1189 = vmatpush1.bf16.msra.mxu0 %v1165
        %1190 = vmatprep.subr.bf16.mxu0 0
        %1191 = vmatpush1.bf16.msra.mxu0 %v1164
        %1192 = vmatprep.subr.bf16.mxu0 0
        %1193 = vmatpush2.bf16.msra.mxu0 0
        %1194 = vmatprep.subr.bf16.mxu0 0
        %1195 = vmatpush2.bf16.msra.mxu0 0
        %1196 = vmatprep.subr.bf16.mxu0 0
        %1197 = vmatpush2.bf16.msra.mxu0 0
        %1198 = vmatprep.subr.bf16.mxu0 0
        %1199 = vmatpush2.bf16.msra.mxu0 0
        %1200 = vmatprep.subr.bf16.mxu0 0
        %1201 = vmatpush2.bf16.msra.mxu0 0
        %1202 = vmatprep.subr.bf16.mxu0 0
        %1203 = vmatpush2.bf16.msra.mxu0 0
        %1204 = vmatprep.subr.bf16.mxu0 0
        %1205 = vmatpush2.bf16.msra.mxu0 0
        %1206 = vmatprep.subr.bf16.mxu0 0
        %1207 = vmatpush2.bf16.msra.mxu0 0
        %1208 = vmatprep.mubr.bf16.mxu0 0
        %1209 = vmatmul.mubr.bf16.gmra.mxu0 %v1174
        %v1210 = vpop.f32.mrf.mxu0
        %v1211 = vadd.f32 %v1147, %v1210
        %v1212 = vpop.f32.mrf.mxu0
        %v1213 = vpop.f32.mrf.mxu0
        %v1214 = vpop.f32.mrf.mxu0
        %1215 = vdwg.mxu0
        %v1216 = vadd.f32 %v1211, %v1036
        %1217 = vst.msk [vmem:[#allocation2] sm:$0xff] %vm428, %v1216
        %p1218 = scmp.eq.s32.totalorder %s29, 1
        // Predicated region
        $region57: #{transformer_forward.1} parent=47 // pred_check
          %p1219 = pneg %p1218
        $region58: #{transformer_forward.1} parent=47 // pred_check_branch
          %1221 = sbr.rel (%p1219) target = $region60
        $region59: #{transformer_forward.1} parent=47 // pred_region
          %1222 = vst.msk [vmem:[%s389] sm:$0xff] %vm428, %v1216
        $region60: #{transformer_forward.1} parent=47 // pred_fallthru
          _
        %s1223 = sand.u32 %s226, 1
        %s1224 = scalar_lea.sflag [#allocation5], %s1223
        %s1225 = sand.u32 %s226, 1
        %s1226 = smul.addr %s1225, 8
        %s1227 = scalar_lea.vmem [#allocation6], %s1226
        // Predicated region
        $region61: #{transformer_forward.1} parent=47 // pred_check
          %p1228 = pneg %p236
        $region62: #{transformer_forward.1} parent=47 // pred_check_branch
          %1230 = sbr.rel (%p1228) target = $region64
        $region63: #{transformer_forward.1} parent=47 // pred_region
          %s1232 = ssub.s32 128, 128
          %1233 = vsyncadd %s1224, %s1232
          %s1234 = smul.addr %s28, 128
          %s1235 = scalar_lea.hbm %s7, %s1234
          %s1237 = sshll.u32 %s1227, 4
          %s1238 = int_to_ptr.vmem [resolvable:$true] %s1237
          %1240 = dma.vmem_to_hbm [thread:$0]  %s1238, 128, %s1235, %s1224
        $region64: #{transformer_forward.1} parent=47 // pred_fallthru
          _
      $region48: #{transformer_forward.1} parent=5 // pred_fallthru
        _
      %p1241 = scmp.le.s32.totalorder 2, %s19
      // Predicated region
      $region65: #{transformer_forward.1} parent=5 // pred_check
        %p1242 = pneg %p1241
      $region66: #{transformer_forward.1} parent=5 // pred_check_branch
        %1244 = sbr.rel (%p1242) target = $region68
      $region67: #{transformer_forward.1} parent=5 // pred_region
        %s1245 = ssub.s32 %s19, 2
        // Predicated region
        $region69: #{transformer_forward.1} parent=67 // pred_check
          %p1246 = pneg %p242
        $region70: #{transformer_forward.1} parent=67 // pred_check_branch
          %1248 = sbr.rel (%p1246) target = $region72
        $region71: #{transformer_forward.1} parent=67 // pred_region
          %s1249 = sand.u32 %s227, 1
          %s1250 = scalar_lea.sflag [#allocation5], %s1249
          %s1251 = sand.u32 %s227, 1
          %s1252 = smul.addr %s1251, 8
          %s1253 = scalar_lea.vmem [#allocation6], %s1252
          %1254 = dma.done %s1250, 128
        $region72: #{transformer_forward.1} parent=67 // pred_fallthru
          _
      $region68: #{transformer_forward.1} parent=5 // pred_fallthru
        _
    $region6: #{transformer_forward.1} parent=1 // loop_footer
      %s23 = sadd.s32 1, %s19
    $region7: #{transformer_forward.1} parent=1 // loop_footer_branch
      %18 = sbr.rel target = $region3
    $region8: #{transformer_forward.1} parent=1 // loop_exit
      _
    %1255 = vsyncpa [#allocation4], 1
    %s1256 = scalar_lea.sflag [#allocation4], 1
    %1257 = vsyncpa %s1256, 1
    %1258 = vsyncpa [#allocation5], 1
    %s1259 = scalar_lea.sflag [#allocation5], 1
    %1260 = vsyncpa %s1259, 1

</llo_original>
